<compile_context>
chip_gen: v6e
topology: v6e:2x2x1
jax: 0.10.0
libtpu: 0.0.40
codegen_flags: <defaults>
</compile_context>

<pallas_src>
import functools

import jax
import jax.numpy as jnp
from jax import lax
from jax.experimental import pallas as pl
from jax.experimental.pallas import tpu as pltpu

DIM = 27           # autoencoder3(dim=27)
NUM_CLASSES = 1    # default -> classifier head (fc_layers/softmax) is skipped
HIDDENS = (32, 16, 8, 16, 32, DIM)

_ALIGN = 256              # MXU lane width on v6e/v7x (multiple of 128 -> fine on v5e)
_TB_CAP = 4096            # keeps VMEM comfortable on every generation
_VMEM_LIMIT = 32 * 1024 * 1024


def _round_up(a, m):
    return ((a + m - 1) // m) * m


_D_PAD = _round_up(DIM, 8)   # 32: layer-6 rows padded so the output transpose is aligned


def _mish(x):
    # mish(x) = x * tanh(softplus(x)); tanh(log(1+e^x)) == (t^2-1)/(t^2+1) with
    # t = 1 + e^x.  One exp + one approx reciprocal replaces exp+log1p+tanh.
    # Clamp before exp so large x doesn't overflow; for x > 20,
    # tanh(softplus(x)) == 1 to f32 precision so mish(x) == x.
    t = 1.0 + jnp.exp(jnp.minimum(x, 20.0))
    t2 = t * t
    ratio = (t2 - 1.0) * pl.reciprocal(t2 + 1.0, approx=True)
    return jnp.where(x > 20.0, x, x * ratio)


def _ae_kernel(x_ref,
               w1, b1, w2, b2, w3, b3, w4, b4, w5, b5, w6, b6,
               o_ref):
    x_bm = x_ref[...].astype(jnp.float32)                 # (tb, 27) batch-major

    # Layer 1: contract the 27-wide feature dim of the batch-major tile
    # directly (rhs-transposed matmul, same pattern as q @ k.T).
    z1 = lax.dot_general(
        w1[...], x_bm,
        dimension_numbers=(((1,), (1,)), ((), ())),
        preferred_element_type=jnp.float32) + b1[...]      # (32, tb)
    x1 = _mish(z1)

    def lin(w_ref, b_ref, h):                              # (out,in)@(in,tb)+(out,1)
        return (jnp.dot(w_ref[...], h, preferred_element_type=jnp.float32)
                + b_ref[...])

    x2 = _mish(lin(w2, b2, x1))            # (16, tb)
    x3 = _mish(lin(w3, b3, x2))            # ( 8, tb)
    x4 = _mish(lin(w4, b4, x3)) + x2       # (16, tb) skip
    x5 = _mish(lin(w5, b5, x4)) + x1       # (32, tb) skip

    z6 = lin(w6, b6, x5)                   # (32, tb); rows DIM.. are zero padding
    # sigmoid = 1/(1+e^-z): one EUP exp + one approx vrcp, still lane-dense.
    x6 = pl.reciprocal(1.0 + jnp.exp(jnp.minimum(-z6, 30.0)), approx=True)
    # Single aligned XLU transpose back to the batch-major output block; the
    # zero-padded feature rows are dropped by the minor-dim slice.
    x6_bm = x6.T                           # (tb, 32)
    o_ref[...] = x6_bm[:, :DIM].astype(o_ref.dtype)
    # NUM_CLASSES == 1 -> fc_layers / softmax branch of forward() is not taken.


def _choose_tb(B, tb):
    tb = max(_ALIGN, min(_round_up(tb, _ALIGN), _TB_CAP))
    tb = min(tb, _round_up(B, _ALIGN))
    n_tiles = pl.cdiv(B, tb)
    # Keep >= 2 grid steps when the batch allows it so both v7x TCs get work.
    if B > _ALIGN and n_tiles < 2:
        tb = _round_up(pl.cdiv(B, 2), _ALIGN)
        n_tiles = pl.cdiv(B, tb)
    # Prefer an even tile count (v7x 2-TC balance) when large.
    if n_tiles > 2 and n_tiles % 2 == 1:
        tb_even = _round_up(pl.cdiv(B, n_tiles + 1), _ALIGN)
        if pl.cdiv(B, tb_even) % 2 == 0:
            tb = tb_even
            n_tiles = pl.cdiv(B, tb)
    return tb, n_tiles


@functools.partial(jax.jit, static_argnames=("tb",))
def autoencoder3_forward(x, params, tb=4096):
    """x: (B, DIM) as in the torch module; params: [(W(out,in), b(out,1)), ...]."""
    B, dim = x.shape
    assert dim == DIM
    tb, n_tiles = _choose_tb(B, tb)

    # Zero-pad the last layer's rows 27 -> 32 so the in-kernel output transpose
    # is (8,128)-native.  Extra rows compute sigmoid(0) and are sliced away.
    (w1, b1), (w2, b2), (w3, b3), (w4, b4), (w5, b5), (w6, b6) = params
    w6p = jnp.pad(w6, ((0, _D_PAD - DIM), (0, 0)))
    b6p = jnp.pad(b6, ((0, _D_PAD - DIM), (0, 0)))
    plist = [(w1, b1), (w2, b2), (w3, b3), (w4, b4), (w5, b5), (w6p, b6p)]

    flat_params, param_specs = [], []
    for (w, b) in plist:
        flat_params += [w, b]
        # Whole-array blocks with constant index maps: DMA'd once, VMEM-resident.
        param_specs += [pl.BlockSpec(w.shape, lambda i: (0, 0)),
                        pl.BlockSpec(b.shape, lambda i: (0, 0))]

    return pl.pallas_call(
        _ae_kernel,
        out_shape=jax.ShapeDtypeStruct((B, DIM), x.dtype),
        grid_spec=pltpu.PrefetchScalarGridSpec(
            num_scalar_prefetch=0,
            grid=(n_tiles,),
            in_specs=[pl.BlockSpec((tb, DIM), lambda i: (i, 0))] + param_specs,
            out_specs=pl.BlockSpec((tb, DIM), lambda i: (i, 0)),
        ),
        compiler_params=pltpu.CompilerParams(
            dimension_semantics=("parallel",),
            vmem_limit_bytes=_VMEM_LIMIT),
    )(x, *flat_params)


def make_params(key):
    """PyTorch-Linear-style init. Returns list of (W[out,in], b[out,1]) — native torch layout."""
    dims_in = (DIM,) + HIDDENS[:-1]
    params = []
    for d_in, d_out in zip(dims_in, HIDDENS):
        key, kw, kb = jax.random.split(key, 3)
        bound = 1.0 / jnp.sqrt(d_in)
        w = jax.random.uniform(kw, (d_out, d_in), jnp.float32, -bound, bound)
        b = jax.random.uniform(kb, (d_out, 1), jnp.float32, -bound, bound)
        params.append((w, b))
    return params


def _reference(x, params):
    def lin(h, w, b):
        return h @ w.T + b[:, 0]

    def mish(v):
        return v * jnp.tanh(jax.nn.softplus(v))

    (w1, b1), (w2, b2), (w3, b3), (w4, b4), (w5, b5), (w6, b6) = params
    x1 = mish(lin(x, w1, b1))
    x2 = mish(lin(x1, w2, b2))
    x3 = mish(lin(x2, w3, b3))
    x4 = mish(lin(x3, w4, b4)) + x2
    x5 = mish(lin(x4, w5, b5)) + x1
    return jax.nn.sigmoid(lin(x5, w6, b6))


if __name__ == "__main__":
    key = jax.random.PRNGKey(0)
    kx, kp = jax.random.split(key)
    B = 512                      # -> tb=256, 2 grid steps (keeps both v7x TCs busy)
    x = jax.random.normal(kx, (B, DIM), jnp.float32)
    params = make_params(kp)

    out = autoencoder3_forward(x, params)
    out = jax.block_until_ready(out)

    ref = _reference(x, params)
    assert out.shape == (B, DIM)
    # Approximate EUP reciprocals (mish + sigmoid) give ~1e-4-level error;
    # structural bugs would show at >1e-2.
    err = jnp.max(jnp.abs(out - ref))
    assert err < 5e-3, f"mismatch vs pure-JAX reference: {err}"
    print("KERNEL_OK")
</pallas_src>

<mosaic_0001>
module attributes {stable_mosaic.version = 11 : i64} {
  func.func @_ae_kernel(%arg0: i32, %arg1: memref<256x27xf32, #tpu.memory_space<vmem>>, %arg2: memref<32x27xf32, #tpu.memory_space<vmem>>, %arg3: memref<32x1xf32, #tpu.memory_space<vmem>>, %arg4: memref<16x32xf32, #tpu.memory_space<vmem>>, %arg5: memref<16x1xf32, #tpu.memory_space<vmem>>, %arg6: memref<8x16xf32, #tpu.memory_space<vmem>>, %arg7: memref<8x1xf32, #tpu.memory_space<vmem>>, %arg8: memref<16x8xf32, #tpu.memory_space<vmem>>, %arg9: memref<16x1xf32, #tpu.memory_space<vmem>>, %arg10: memref<32x16xf32, #tpu.memory_space<vmem>>, %arg11: memref<32x1xf32, #tpu.memory_space<vmem>>, %arg12: memref<32x32xf32, #tpu.memory_space<vmem>>, %arg13: memref<32x1xf32, #tpu.memory_space<vmem>>, %arg14: memref<256x27xf32, #tpu.memory_space<vmem>>) attributes {dimension_semantics = [#tpu.dimension_semantics<parallel>], iteration_bounds = array<i64: 2>, scalar_prefetch = 0 : i64, scratch_operands = 0 : i64, tpu.core_type = #tpu.core_type<tc>, window_params = [{transform_indices = @transform_0, window_bounds = array<i64: 256, 27>}, {pipeline_mode = #tpu.pipeline_mode<synchronous>, transform_indices = @transform_1, window_bounds = array<i64: 32, 27>}, {pipeline_mode = #tpu.pipeline_mode<synchronous>, transform_indices = @transform_2, window_bounds = array<i64: 32, 1>}, {pipeline_mode = #tpu.pipeline_mode<synchronous>, transform_indices = @transform_3, window_bounds = array<i64: 16, 32>}, {pipeline_mode = #tpu.pipeline_mode<synchronous>, transform_indices = @transform_4, window_bounds = array<i64: 16, 1>}, {pipeline_mode = #tpu.pipeline_mode<synchronous>, transform_indices = @transform_5, window_bounds = array<i64: 8, 16>}, {pipeline_mode = #tpu.pipeline_mode<synchronous>, transform_indices = @transform_6, window_bounds = array<i64: 8, 1>}, {pipeline_mode = #tpu.pipeline_mode<synchronous>, transform_indices = @transform_7, window_bounds = array<i64: 16, 8>}, {pipeline_mode = #tpu.pipeline_mode<synchronous>, transform_indices = @transform_8, window_bounds = array<i64: 16, 1>}, {pipeline_mode = #tpu.pipeline_mode<synchronous>, transform_indices = @transform_9, window_bounds = array<i64: 32, 16>}, {pipeline_mode = #tpu.pipeline_mode<synchronous>, transform_indices = @transform_10, window_bounds = array<i64: 32, 1>}, {pipeline_mode = #tpu.pipeline_mode<synchronous>, transform_indices = @transform_11, window_bounds = array<i64: 32, 32>}, {pipeline_mode = #tpu.pipeline_mode<synchronous>, transform_indices = @transform_12, window_bounds = array<i64: 32, 1>}, {transform_indices = @transform_13, window_bounds = array<i64: 256, 27>}]} {
    %c0 = arith.constant 0 : index
    %c0_0 = arith.constant 0 : index
    %0 = vector.load %arg1[%c0, %c0_0] : memref<256x27xf32, #tpu.memory_space<vmem>>, vector<256x27xf32>
    %c0_1 = arith.constant 0 : index
    %c0_2 = arith.constant 0 : index
    %1 = vector.load %arg2[%c0_1, %c0_2] : memref<32x27xf32, #tpu.memory_space<vmem>>, vector<32x27xf32>
    %cst = arith.constant dense<0.000000e+00> : vector<32x256xf32>
    %2 = tpu.matmul %1, %0, %cst {dimension_numbers = #tpu.dot_dimension_numbers<[1], [1], [0], [0], [0, 0, 1, 0], [], []>} : vector<32x27xf32>, vector<256x27xf32>, vector<32x256xf32> -> vector<32x256xf32>
    %c0_3 = arith.constant 0 : index
    %c0_4 = arith.constant 0 : index
    %3 = vector.load %arg3[%c0_3, %c0_4] : memref<32x1xf32, #tpu.memory_space<vmem>>, vector<32x1xf32>
    %4 = vector.broadcast %3 : vector<32x1xf32> to vector<32x256xf32>
    %5 = arith.addf %2, %4 : vector<32x256xf32>
    %cst_5 = arith.constant 2.000000e+01 : f32
    %6 = vector.broadcast %cst_5 : f32 to vector<32x256xf32>
    %7 = arith.minimumf %5, %6 : vector<32x256xf32>
    %8 = math.exp %7 : vector<32x256xf32>
    %cst_6 = arith.constant 1.000000e+00 : f32
    %9 = vector.broadcast %cst_6 : f32 to vector<32x256xf32>
    %10 = arith.addf %9, %8 : vector<32x256xf32>
    %11 = arith.mulf %10, %10 : vector<32x256xf32>
    %cst_7 = arith.constant 1.000000e+00 : f32
    %12 = vector.broadcast %cst_7 : f32 to vector<32x256xf32>
    %13 = arith.subf %11, %12 : vector<32x256xf32>
    %cst_8 = arith.constant 1.000000e+00 : f32
    %14 = vector.broadcast %cst_8 : f32 to vector<32x256xf32>
    %15 = arith.addf %11, %14 : vector<32x256xf32>
    %16 = tpu.reciprocal %15 {approx = true} : vector<32x256xf32> -> vector<32x256xf32>
    %17 = arith.mulf %13, %16 : vector<32x256xf32>
    %cst_9 = arith.constant 2.000000e+01 : f32
    %18 = vector.broadcast %cst_9 : f32 to vector<32x256xf32>
    %19 = arith.cmpf ogt, %5, %18 : vector<32x256xf32>
    %20 = arith.mulf %5, %17 : vector<32x256xf32>
    %21 = arith.select %19, %5, %20 : vector<32x256xi1>, vector<32x256xf32>
    %c0_10 = arith.constant 0 : index
    %c0_11 = arith.constant 0 : index
    %22 = vector.load %arg4[%c0_10, %c0_11] : memref<16x32xf32, #tpu.memory_space<vmem>>, vector<16x32xf32>
    %cst_12 = arith.constant dense<0.000000e+00> : vector<16x256xf32>
    %23 = tpu.matmul %22, %21, %cst_12 {dimension_numbers = #tpu.dot_dimension_numbers<[1], [0], [0], [1], [0, 0, 1, 1], [], []>} : vector<16x32xf32>, vector<32x256xf32>, vector<16x256xf32> -> vector<16x256xf32>
    %c0_13 = arith.constant 0 : index
    %c0_14 = arith.constant 0 : index
    %24 = vector.load %arg5[%c0_13, %c0_14] : memref<16x1xf32, #tpu.memory_space<vmem>>, vector<16x1xf32>
    %25 = vector.broadcast %24 : vector<16x1xf32> to vector<16x256xf32>
    %26 = arith.addf %23, %25 : vector<16x256xf32>
    %cst_15 = arith.constant 2.000000e+01 : f32
    %27 = vector.broadcast %cst_15 : f32 to vector<16x256xf32>
    %28 = arith.minimumf %26, %27 : vector<16x256xf32>
    %29 = math.exp %28 : vector<16x256xf32>
    %cst_16 = arith.constant 1.000000e+00 : f32
    %30 = vector.broadcast %cst_16 : f32 to vector<16x256xf32>
    %31 = arith.addf %30, %29 : vector<16x256xf32>
    %32 = arith.mulf %31, %31 : vector<16x256xf32>
    %cst_17 = arith.constant 1.000000e+00 : f32
    %33 = vector.broadcast %cst_17 : f32 to vector<16x256xf32>
    %34 = arith.subf %32, %33 : vector<16x256xf32>
    %cst_18 = arith.constant 1.000000e+00 : f32
    %35 = vector.broadcast %cst_18 : f32 to vector<16x256xf32>
    %36 = arith.addf %32, %35 : vector<16x256xf32>
    %37 = tpu.reciprocal %36 {approx = true} : vector<16x256xf32> -> vector<16x256xf32>
    %38 = arith.mulf %34, %37 : vector<16x256xf32>
    %cst_19 = arith.constant 2.000000e+01 : f32
    %39 = vector.broadcast %cst_19 : f32 to vector<16x256xf32>
    %40 = arith.cmpf ogt, %26, %39 : vector<16x256xf32>
    %41 = arith.mulf %26, %38 : vector<16x256xf32>
    %42 = arith.select %40, %26, %41 : vector<16x256xi1>, vector<16x256xf32>
    %c0_20 = arith.constant 0 : index
    %c0_21 = arith.constant 0 : index
    %43 = vector.load %arg6[%c0_20, %c0_21] : memref<8x16xf32, #tpu.memory_space<vmem>>, vector<8x16xf32>
    %cst_22 = arith.constant dense<0.000000e+00> : vector<8x256xf32>
    %44 = tpu.matmul %43, %42, %cst_22 {dimension_numbers = #tpu.dot_dimension_numbers<[1], [0], [0], [1], [0, 0, 1, 1], [], []>} : vector<8x16xf32>, vector<16x256xf32>, vector<8x256xf32> -> vector<8x256xf32>
    %c0_23 = arith.constant 0 : index
    %c0_24 = arith.constant 0 : index
    %45 = vector.load %arg7[%c0_23, %c0_24] : memref<8x1xf32, #tpu.memory_space<vmem>>, vector<8x1xf32>
    %46 = vector.broadcast %45 : vector<8x1xf32> to vector<8x256xf32>
    %47 = arith.addf %44, %46 : vector<8x256xf32>
    %cst_25 = arith.constant 2.000000e+01 : f32
    %48 = vector.broadcast %cst_25 : f32 to vector<8x256xf32>
    %49 = arith.minimumf %47, %48 : vector<8x256xf32>
    %50 = math.exp %49 : vector<8x256xf32>
    %cst_26 = arith.constant 1.000000e+00 : f32
    %51 = vector.broadcast %cst_26 : f32 to vector<8x256xf32>
    %52 = arith.addf %51, %50 : vector<8x256xf32>
    %53 = arith.mulf %52, %52 : vector<8x256xf32>
    %cst_27 = arith.constant 1.000000e+00 : f32
    %54 = vector.broadcast %cst_27 : f32 to vector<8x256xf32>
    %55 = arith.subf %53, %54 : vector<8x256xf32>
    %cst_28 = arith.constant 1.000000e+00 : f32
    %56 = vector.broadcast %cst_28 : f32 to vector<8x256xf32>
    %57 = arith.addf %53, %56 : vector<8x256xf32>
    %58 = tpu.reciprocal %57 {approx = true} : vector<8x256xf32> -> vector<8x256xf32>
    %59 = arith.mulf %55, %58 : vector<8x256xf32>
    %cst_29 = arith.constant 2.000000e+01 : f32
    %60 = vector.broadcast %cst_29 : f32 to vector<8x256xf32>
    %61 = arith.cmpf ogt, %47, %60 : vector<8x256xf32>
    %62 = arith.mulf %47, %59 : vector<8x256xf32>
    %63 = arith.select %61, %47, %62 : vector<8x256xi1>, vector<8x256xf32>
    %c0_30 = arith.constant 0 : index
    %c0_31 = arith.constant 0 : index
    %64 = vector.load %arg8[%c0_30, %c0_31] : memref<16x8xf32, #tpu.memory_space<vmem>>, vector<16x8xf32>
    %cst_32 = arith.constant dense<0.000000e+00> : vector<16x256xf32>
    %65 = tpu.matmul %64, %63, %cst_32 {dimension_numbers = #tpu.dot_dimension_numbers<[1], [0], [0], [1], [0, 0, 1, 1], [], []>} : vector<16x8xf32>, vector<8x256xf32>, vector<16x256xf32> -> vector<16x256xf32>
    %c0_33 = arith.constant 0 : index
    %c0_34 = arith.constant 0 : index
    %66 = vector.load %arg9[%c0_33, %c0_34] : memref<16x1xf32, #tpu.memory_space<vmem>>, vector<16x1xf32>
    %67 = vector.broadcast %66 : vector<16x1xf32> to vector<16x256xf32>
    %68 = arith.addf %65, %67 : vector<16x256xf32>
    %cst_35 = arith.constant 2.000000e+01 : f32
    %69 = vector.broadcast %cst_35 : f32 to vector<16x256xf32>
    %70 = arith.minimumf %68, %69 : vector<16x256xf32>
    %71 = math.exp %70 : vector<16x256xf32>
    %cst_36 = arith.constant 1.000000e+00 : f32
    %72 = vector.broadcast %cst_36 : f32 to vector<16x256xf32>
    %73 = arith.addf %72, %71 : vector<16x256xf32>
    %74 = arith.mulf %73, %73 : vector<16x256xf32>
    %cst_37 = arith.constant 1.000000e+00 : f32
    %75 = vector.broadcast %cst_37 : f32 to vector<16x256xf32>
    %76 = arith.subf %74, %75 : vector<16x256xf32>
    %cst_38 = arith.constant 1.000000e+00 : f32
    %77 = vector.broadcast %cst_38 : f32 to vector<16x256xf32>
    %78 = arith.addf %74, %77 : vector<16x256xf32>
    %79 = tpu.reciprocal %78 {approx = true} : vector<16x256xf32> -> vector<16x256xf32>
    %80 = arith.mulf %76, %79 : vector<16x256xf32>
    %cst_39 = arith.constant 2.000000e+01 : f32
    %81 = vector.broadcast %cst_39 : f32 to vector<16x256xf32>
    %82 = arith.cmpf ogt, %68, %81 : vector<16x256xf32>
    %83 = arith.mulf %68, %80 : vector<16x256xf32>
    %84 = arith.select %82, %68, %83 : vector<16x256xi1>, vector<16x256xf32>
    %85 = arith.addf %84, %42 : vector<16x256xf32>
    %c0_40 = arith.constant 0 : index
    %c0_41 = arith.constant 0 : index
    %86 = vector.load %arg10[%c0_40, %c0_41] : memref<32x16xf32, #tpu.memory_space<vmem>>, vector<32x16xf32>
    %cst_42 = arith.constant dense<0.000000e+00> : vector<32x256xf32>
    %87 = tpu.matmul %86, %85, %cst_42 {dimension_numbers = #tpu.dot_dimension_numbers<[1], [0], [0], [1], [0, 0, 1, 1], [], []>} : vector<32x16xf32>, vector<16x256xf32>, vector<32x256xf32> -> vector<32x256xf32>
    %c0_43 = arith.constant 0 : index
    %c0_44 = arith.constant 0 : index
    %88 = vector.load %arg11[%c0_43, %c0_44] : memref<32x1xf32, #tpu.memory_space<vmem>>, vector<32x1xf32>
    %89 = vector.broadcast %88 : vector<32x1xf32> to vector<32x256xf32>
    %90 = arith.addf %87, %89 : vector<32x256xf32>
    %cst_45 = arith.constant 2.000000e+01 : f32
    %91 = vector.broadcast %cst_45 : f32 to vector<32x256xf32>
    %92 = arith.minimumf %90, %91 : vector<32x256xf32>
    %93 = math.exp %92 : vector<32x256xf32>
    %cst_46 = arith.constant 1.000000e+00 : f32
    %94 = vector.broadcast %cst_46 : f32 to vector<32x256xf32>
    %95 = arith.addf %94, %93 : vector<32x256xf32>
    %96 = arith.mulf %95, %95 : vector<32x256xf32>
    %cst_47 = arith.constant 1.000000e+00 : f32
    %97 = vector.broadcast %cst_47 : f32 to vector<32x256xf32>
    %98 = arith.subf %96, %97 : vector<32x256xf32>
    %cst_48 = arith.constant 1.000000e+00 : f32
    %99 = vector.broadcast %cst_48 : f32 to vector<32x256xf32>
    %100 = arith.addf %96, %99 : vector<32x256xf32>
    %101 = tpu.reciprocal %100 {approx = true} : vector<32x256xf32> -> vector<32x256xf32>
    %102 = arith.mulf %98, %101 : vector<32x256xf32>
    %cst_49 = arith.constant 2.000000e+01 : f32
    %103 = vector.broadcast %cst_49 : f32 to vector<32x256xf32>
    %104 = arith.cmpf ogt, %90, %103 : vector<32x256xf32>
    %105 = arith.mulf %90, %102 : vector<32x256xf32>
    %106 = arith.select %104, %90, %105 : vector<32x256xi1>, vector<32x256xf32>
    %107 = arith.addf %106, %21 : vector<32x256xf32>
    %c0_50 = arith.constant 0 : index
    %c0_51 = arith.constant 0 : index
    %108 = vector.load %arg12[%c0_50, %c0_51] : memref<32x32xf32, #tpu.memory_space<vmem>>, vector<32x32xf32>
    %cst_52 = arith.constant dense<0.000000e+00> : vector<32x256xf32>
    %109 = tpu.matmul %108, %107, %cst_52 {dimension_numbers = #tpu.dot_dimension_numbers<[1], [0], [0], [1], [0, 0, 1, 1], [], []>} : vector<32x32xf32>, vector<32x256xf32>, vector<32x256xf32> -> vector<32x256xf32>
    %c0_53 = arith.constant 0 : index
    %c0_54 = arith.constant 0 : index
    %110 = vector.load %arg13[%c0_53, %c0_54] : memref<32x1xf32, #tpu.memory_space<vmem>>, vector<32x1xf32>
    %111 = vector.broadcast %110 : vector<32x1xf32> to vector<32x256xf32>
    %112 = arith.addf %109, %111 : vector<32x256xf32>
    %cst_55 = arith.constant 0.000000e+00 : f32
    %113 = vector.broadcast %cst_55 : f32 to vector<32x256xf32>
    %114 = arith.subf %113, %112 : vector<32x256xf32>
    %cst_56 = arith.constant 3.000000e+01 : f32
    %115 = vector.broadcast %cst_56 : f32 to vector<32x256xf32>
    %116 = arith.minimumf %114, %115 : vector<32x256xf32>
    %117 = math.exp %116 : vector<32x256xf32>
    %cst_57 = arith.constant 1.000000e+00 : f32
    %118 = vector.broadcast %cst_57 : f32 to vector<32x256xf32>
    %119 = arith.addf %118, %117 : vector<32x256xf32>
    %120 = tpu.reciprocal %119 {approx = true} : vector<32x256xf32> -> vector<32x256xf32>
    %121 = tpu.transpose %120, [1, 0] : vector<32x256xf32> -> vector<256x32xf32>
    %122 = vector.extract_strided_slice %121 {offsets = [0, 0], sizes = [256, 27], strides = [1, 1]} : vector<256x32xf32> to vector<256x27xf32>
    %c0_58 = arith.constant 0 : index
    %c0_59 = arith.constant 0 : index
    %123 = vector.load %arg14[%c0_58, %c0_59] : memref<256x27xf32, #tpu.memory_space<vmem>>, vector<256x27xf32>
    tpu.vector_store %arg14[%c0_58, %c0_59], %122 {strides = array<i32>} : memref<256x27xf32, #tpu.memory_space<vmem>>, vector<256x27xf32>,
    return
  }
  func.func @transform_0(%arg0: i32) -> (i32, i32) {
    %c0_i32 = arith.constant 0 : i32
    %c0_i32_0 = arith.constant 0 : i32
    return %arg0, %c0_i32 : i32, i32
  }
  func.func @transform_1(%arg0: i32) -> (i32, i32) {
    %c0_i32 = arith.constant 0 : i32
    %c0_i32_0 = arith.constant 0 : i32
    %c0_i32_1 = arith.constant 0 : i32
    return %c0_i32, %c0_i32_0 : i32, i32
  }
  func.func @transform_2(%arg0: i32) -> (i32, i32) {
    %c0_i32 = arith.constant 0 : i32
    %c0_i32_0 = arith.constant 0 : i32
    %c0_i32_1 = arith.constant 0 : i32
    return %c0_i32, %c0_i32_0 : i32, i32
  }
  func.func @transform_3(%arg0: i32) -> (i32, i32) {
    %c0_i32 = arith.constant 0 : i32
    %c0_i32_0 = arith.constant 0 : i32
    %c0_i32_1 = arith.constant 0 : i32
    return %c0_i32, %c0_i32_0 : i32, i32
  }
  func.func @transform_4(%arg0: i32) -> (i32, i32) {
    %c0_i32 = arith.constant 0 : i32
    %c0_i32_0 = arith.constant 0 : i32
    %c0_i32_1 = arith.constant 0 : i32
    return %c0_i32, %c0_i32_0 : i32, i32
  }
  func.func @transform_5(%arg0: i32) -> (i32, i32) {
    %c0_i32 = arith.constant 0 : i32
    %c0_i32_0 = arith.constant 0 : i32
    %c0_i32_1 = arith.constant 0 : i32
    return %c0_i32, %c0_i32_0 : i32, i32
  }
  func.func @transform_6(%arg0: i32) -> (i32, i32) {
    %c0_i32 = arith.constant 0 : i32
    %c0_i32_0 = arith.constant 0 : i32
    %c0_i32_1 = arith.constant 0 : i32
    return %c0_i32, %c0_i32_0 : i32, i32
  }
  func.func @transform_7(%arg0: i32) -> (i32, i32) {
    %c0_i32 = arith.constant 0 : i32
    %c0_i32_0 = arith.constant 0 : i32
    %c0_i32_1 = arith.constant 0 : i32
    return %c0_i32, %c0_i32_0 : i32, i32
  }
  func.func @transform_8(%arg0: i32) -> (i32, i32) {
    %c0_i32 = arith.constant 0 : i32
    %c0_i32_0 = arith.constant 0 : i32
    %c0_i32_1 = arith.constant 0 : i32
    return %c0_i32, %c0_i32_0 : i32, i32
  }
  func.func @transform_9(%arg0: i32) -> (i32, i32) {
    %c0_i32 = arith.constant 0 : i32
    %c0_i32_0 = arith.constant 0 : i32
    %c0_i32_1 = arith.constant 0 : i32
    return %c0_i32, %c0_i32_0 : i32, i32
  }
  func.func @transform_10(%arg0: i32) -> (i32, i32) {
    %c0_i32 = arith.constant 0 : i32
    %c0_i32_0 = arith.constant 0 : i32
    %c0_i32_1 = arith.constant 0 : i32
    return %c0_i32, %c0_i32_0 : i32, i32
  }
  func.func @transform_11(%arg0: i32) -> (i32, i32) {
    %c0_i32 = arith.constant 0 : i32
    %c0_i32_0 = arith.constant 0 : i32
    %c0_i32_1 = arith.constant 0 : i32
    return %c0_i32, %c0_i32_0 : i32, i32
  }
  func.func @transform_12(%arg0: i32) -> (i32, i32) {
    %c0_i32 = arith.constant 0 : i32
    %c0_i32_0 = arith.constant 0 : i32
    %c0_i32_1 = arith.constant 0 : i32
    return %c0_i32, %c0_i32_0 : i32, i32
  }
  func.func @transform_13(%arg0: i32) -> (i32, i32) {
    %c0_i32 = arith.constant 0 : i32
    %c0_i32_0 = arith.constant 0 : i32
    return %arg0, %c0_i32 : i32, i32
  }
}

</mosaic_0001>

<llo_original>
// kernel: autoencoder3_forward.1
$region0: #{autoencoder3_forward.1}
  #allocation0 [shape = 'u32[]', space=smem, size = 0x4, offset = 0x4, fixed_abs, tag = 'smem constant byte address 0x4 - core index']
  #allocation1 [shape = 'u32[144,128]{1,0:T(1,128)}', space=vmem, size = 0x12000, scoped, tag = 'internal scratch']
  %s0 = inlined_call_operand.vmem [shape: f32[512,27], index: 0, kind: input, shape index: {}]
  %s1 = inlined_call_operand.vmem [shape: f32[32,27], index: 1, kind: input, shape index: {}]
  %s2 = inlined_call_operand.vmem [shape: f32[32,1], index: 2, kind: input, shape index: {}]
  %s3 = inlined_call_operand.vmem [shape: f32[16,32], index: 3, kind: input, shape index: {}]
  %s4 = inlined_call_operand.vmem [shape: f32[16,1], index: 4, kind: input, shape index: {}]
  %s5 = inlined_call_operand.vmem [shape: f32[8,16], index: 5, kind: input, shape index: {}]
  %s6 = inlined_call_operand.vmem [shape: f32[8,1], index: 6, kind: input, shape index: {}]
  %s7 = inlined_call_operand.vmem [shape: f32[16,8], index: 7, kind: input, shape index: {}]
  %s8 = inlined_call_operand.vmem [shape: f32[16,1], index: 8, kind: input, shape index: {}]
  %s9 = inlined_call_operand.vmem [shape: f32[32,16], index: 9, kind: input, shape index: {}]
  %s10 = inlined_call_operand.vmem [shape: f32[32,1], index: 10, kind: input, shape index: {}]
  %s11 = inlined_call_operand.vmem [shape: f32[32,32], index: 11, kind: input, shape index: {}]
  %s12 = inlined_call_operand.vmem [shape: f32[32,1], index: 12, kind: input, shape index: {}]
  %s13 = inlined_call_operand.vmem [shape: f32[512,27], index: 13, kind: output, shape index: {}]
  %s14 = sld [smem:[#allocation0]]
  $region85: #{autoencoder3_forward.1} parent=0
    _
  %s16 = ssub.s32 1, %s14
  %s17 = scalar_select 0, %s16, %s14
  loop: start=0, step=1, limit=4
  $region2: #{autoencoder3_forward.1} parent=0 // loop_pre_header
    _
  $region3: #{autoencoder3_forward.1} parent=0 // loop_header
    %s19 = sphi 0, %s23
    %p20 = scmp.ge.s32.totalorder %s19, 4
    %s29 = sphi 0, %s31
    %s32 = sphi 0, %s29
    %s33 = sphi 0, %s32
    %s49 = sphi 0, %s33
    %s53 = sphi 0, %s53
    %s55 = sphi 0, %s53
    %s56 = sphi 0, %s55
    %s70 = sphi 0, %s56
    %s74 = sphi 0, %s74
    %s76 = sphi 0, %s74
    %s77 = sphi 0, %s76
    %s91 = sphi 0, %s77
    %s95 = sphi 0, %s95
    %s97 = sphi 0, %s95
    %s98 = sphi 0, %s97
    %s112 = sphi 0, %s98
    %s116 = sphi 0, %s116
    %s118 = sphi 0, %s116
    %s119 = sphi 0, %s118
    %s133 = sphi 0, %s119
    %s137 = sphi 0, %s137
    %s139 = sphi 0, %s137
    %s140 = sphi 0, %s139
    %s154 = sphi 0, %s140
    %s158 = sphi 0, %s158
    %s160 = sphi 0, %s158
    %s161 = sphi 0, %s160
    %s175 = sphi 0, %s161
    %s179 = sphi 0, %s179
    %s181 = sphi 0, %s179
    %s182 = sphi 0, %s181
    %s196 = sphi 0, %s182
    %s200 = sphi 0, %s200
    %s202 = sphi 0, %s200
    %s203 = sphi 0, %s202
    %s217 = sphi 0, %s203
    %s221 = sphi 0, %s221
    %s223 = sphi 0, %s221
    %s224 = sphi 0, %s223
    %s238 = sphi 0, %s224
    %s242 = sphi 0, %s242
    %s244 = sphi 0, %s242
    %s245 = sphi 0, %s244
    %s259 = sphi 0, %s245
    %s263 = sphi 0, %s263
    %s265 = sphi 0, %s263
    %s266 = sphi 0, %s265
    %s280 = sphi 0, %s266
    %s284 = sphi 0, %s284
    %s286 = sphi 0, %s284
    %s287 = sphi 0, %s286
    %s301 = sphi 0, %s287
    %s307 = sphi 0, %s309
    %s310 = sphi 0, %s307
    %s311 = sphi 0, %s310
    %s327 = sphi 0, %s311
  $region4: #{autoencoder3_forward.1} parent=0 // loop_header_branch
    %22 = sbr.rel (%p20) target = $region8
  $region5: #{autoencoder3_forward.1} parent=0 // loop_body
    %s24 = ssub.s32 %s19, 1
    %s25 = ssub.s32 %s19, 2
    %s26 = sadd.s32 %s19, 1
    %s27 = ssub.s32 %s19, %s26
    %p28 = scmp.eq.s32.totalorder %s27, 0
    %s30 = sadd.s32 %s29, 1
    %s31 = scalar_select %p28, %s29, %s30
    %p34 = pneg %p28
    %p35 = scmp.eq.s32.totalorder %s19, 1
    %p36 = por %p34, %p35
    %p37 = scmp.ne.s32.totalorder %s29, %s32
    %p38 = scmp.eq.s32.totalorder %s19, 0
    %p39 = por %p37, %p38
    %p40 = scmp.ne.s32.totalorder %s29, %s32
    %p41 = scmp.eq.s32.totalorder %s24, 1
    %p42 = por %p40, %p41
    %p43 = scmp.ne.s32.totalorder %s32, %s33
    %p44 = scmp.eq.s32.totalorder %s24, 0
    %p45 = por %p43, %p44
    %p46 = scmp.ne.s32.totalorder %s32, %s33
    %p47 = scmp.eq.s32.totalorder %s25, 1
    %p48 = por %p46, %p47
    %p50 = scmp.ne.s32.totalorder %s33, %s49
    %p51 = scmp.eq.s32.totalorder %s25, 0
    %p52 = por %p50, %p51
    %s54 = sadd.s32 %s53, 1
    %p57 = scmp.eq.s32.totalorder %s19, 1
    %p58 = scmp.ne.s32.totalorder %s53, %s55
    %p59 = scmp.eq.s32.totalorder %s19, 0
    %p60 = por %p58, %p59
    %p61 = scmp.ne.s32.totalorder %s53, %s55
    %p62 = scmp.eq.s32.totalorder %s24, 1
    %p63 = por %p61, %p62
    %p64 = scmp.ne.s32.totalorder %s55, %s56
    %p65 = scmp.eq.s32.totalorder %s24, 0
    %p66 = por %p64, %p65
    %p67 = scmp.ne.s32.totalorder %s55, %s56
    %p68 = scmp.eq.s32.totalorder %s25, 1
    %p69 = por %p67, %p68
    %p71 = scmp.ne.s32.totalorder %s56, %s70
    %p72 = scmp.eq.s32.totalorder %s25, 0
    %p73 = por %p71, %p72
    %s75 = sadd.s32 %s74, 1
    %p78 = scmp.eq.s32.totalorder %s19, 1
    %p79 = scmp.ne.s32.totalorder %s74, %s76
    %p80 = scmp.eq.s32.totalorder %s19, 0
    %p81 = por %p79, %p80
    %p82 = scmp.ne.s32.totalorder %s74, %s76
    %p83 = scmp.eq.s32.totalorder %s24, 1
    %p84 = por %p82, %p83
    %p85 = scmp.ne.s32.totalorder %s76, %s77
    %p86 = scmp.eq.s32.totalorder %s24, 0
    %p87 = por %p85, %p86
    %p88 = scmp.ne.s32.totalorder %s76, %s77
    %p89 = scmp.eq.s32.totalorder %s25, 1
    %p90 = por %p88, %p89
    %p92 = scmp.ne.s32.totalorder %s77, %s91
    %p93 = scmp.eq.s32.totalorder %s25, 0
    %p94 = por %p92, %p93
    %s96 = sadd.s32 %s95, 1
    %p99 = scmp.eq.s32.totalorder %s19, 1
    %p100 = scmp.ne.s32.totalorder %s95, %s97
    %p101 = scmp.eq.s32.totalorder %s19, 0
    %p102 = por %p100, %p101
    %p103 = scmp.ne.s32.totalorder %s95, %s97
    %p104 = scmp.eq.s32.totalorder %s24, 1
    %p105 = por %p103, %p104
    %p106 = scmp.ne.s32.totalorder %s97, %s98
    %p107 = scmp.eq.s32.totalorder %s24, 0
    %p108 = por %p106, %p107
    %p109 = scmp.ne.s32.totalorder %s97, %s98
    %p110 = scmp.eq.s32.totalorder %s25, 1
    %p111 = por %p109, %p110
    %p113 = scmp.ne.s32.totalorder %s98, %s112
    %p114 = scmp.eq.s32.totalorder %s25, 0
    %p115 = por %p113, %p114
    %s117 = sadd.s32 %s116, 1
    %p120 = scmp.eq.s32.totalorder %s19, 1
    %p121 = scmp.ne.s32.totalorder %s116, %s118
    %p122 = scmp.eq.s32.totalorder %s19, 0
    %p123 = por %p121, %p122
    %p124 = scmp.ne.s32.totalorder %s116, %s118
    %p125 = scmp.eq.s32.totalorder %s24, 1
    %p126 = por %p124, %p125
    %p127 = scmp.ne.s32.totalorder %s118, %s119
    %p128 = scmp.eq.s32.totalorder %s24, 0
    %p129 = por %p127, %p128
    %p130 = scmp.ne.s32.totalorder %s118, %s119
    %p131 = scmp.eq.s32.totalorder %s25, 1
    %p132 = por %p130, %p131
    %p134 = scmp.ne.s32.totalorder %s119, %s133
    %p135 = scmp.eq.s32.totalorder %s25, 0
    %p136 = por %p134, %p135
    %s138 = sadd.s32 %s137, 1
    %p141 = scmp.eq.s32.totalorder %s19, 1
    %p142 = scmp.ne.s32.totalorder %s137, %s139
    %p143 = scmp.eq.s32.totalorder %s19, 0
    %p144 = por %p142, %p143
    %p145 = scmp.ne.s32.totalorder %s137, %s139
    %p146 = scmp.eq.s32.totalorder %s24, 1
    %p147 = por %p145, %p146
    %p148 = scmp.ne.s32.totalorder %s139, %s140
    %p149 = scmp.eq.s32.totalorder %s24, 0
    %p150 = por %p148, %p149
    %p151 = scmp.ne.s32.totalorder %s139, %s140
    %p152 = scmp.eq.s32.totalorder %s25, 1
    %p153 = por %p151, %p152
    %p155 = scmp.ne.s32.totalorder %s140, %s154
    %p156 = scmp.eq.s32.totalorder %s25, 0
    %p157 = por %p155, %p156
    %s159 = sadd.s32 %s158, 1
    %p162 = scmp.eq.s32.totalorder %s19, 1
    %p163 = scmp.ne.s32.totalorder %s158, %s160
    %p164 = scmp.eq.s32.totalorder %s19, 0
    %p165 = por %p163, %p164
    %p166 = scmp.ne.s32.totalorder %s158, %s160
    %p167 = scmp.eq.s32.totalorder %s24, 1
    %p168 = por %p166, %p167
    %p169 = scmp.ne.s32.totalorder %s160, %s161
    %p170 = scmp.eq.s32.totalorder %s24, 0
    %p171 = por %p169, %p170
    %p172 = scmp.ne.s32.totalorder %s160, %s161
    %p173 = scmp.eq.s32.totalorder %s25, 1
    %p174 = por %p172, %p173
    %p176 = scmp.ne.s32.totalorder %s161, %s175
    %p177 = scmp.eq.s32.totalorder %s25, 0
    %p178 = por %p176, %p177
    %s180 = sadd.s32 %s179, 1
    %p183 = scmp.eq.s32.totalorder %s19, 1
    %p184 = scmp.ne.s32.totalorder %s179, %s181
    %p185 = scmp.eq.s32.totalorder %s19, 0
    %p186 = por %p184, %p185
    %p187 = scmp.ne.s32.totalorder %s179, %s181
    %p188 = scmp.eq.s32.totalorder %s24, 1
    %p189 = por %p187, %p188
    %p190 = scmp.ne.s32.totalorder %s181, %s182
    %p191 = scmp.eq.s32.totalorder %s24, 0
    %p192 = por %p190, %p191
    %p193 = scmp.ne.s32.totalorder %s181, %s182
    %p194 = scmp.eq.s32.totalorder %s25, 1
    %p195 = por %p193, %p194
    %p197 = scmp.ne.s32.totalorder %s182, %s196
    %p198 = scmp.eq.s32.totalorder %s25, 0
    %p199 = por %p197, %p198
    %s201 = sadd.s32 %s200, 1
    %p204 = scmp.eq.s32.totalorder %s19, 1
    %p205 = scmp.ne.s32.totalorder %s200, %s202
    %p206 = scmp.eq.s32.totalorder %s19, 0
    %p207 = por %p205, %p206
    %p208 = scmp.ne.s32.totalorder %s200, %s202
    %p209 = scmp.eq.s32.totalorder %s24, 1
    %p210 = por %p208, %p209
    %p211 = scmp.ne.s32.totalorder %s202, %s203
    %p212 = scmp.eq.s32.totalorder %s24, 0
    %p213 = por %p211, %p212
    %p214 = scmp.ne.s32.totalorder %s202, %s203
    %p215 = scmp.eq.s32.totalorder %s25, 1
    %p216 = por %p214, %p215
    %p218 = scmp.ne.s32.totalorder %s203, %s217
    %p219 = scmp.eq.s32.totalorder %s25, 0
    %p220 = por %p218, %p219
    %s222 = sadd.s32 %s221, 1
    %p225 = scmp.eq.s32.totalorder %s19, 1
    %p226 = scmp.ne.s32.totalorder %s221, %s223
    %p227 = scmp.eq.s32.totalorder %s19, 0
    %p228 = por %p226, %p227
    %p229 = scmp.ne.s32.totalorder %s221, %s223
    %p230 = scmp.eq.s32.totalorder %s24, 1
    %p231 = por %p229, %p230
    %p232 = scmp.ne.s32.totalorder %s223, %s224
    %p233 = scmp.eq.s32.totalorder %s24, 0
    %p234 = por %p232, %p233
    %p235 = scmp.ne.s32.totalorder %s223, %s224
    %p236 = scmp.eq.s32.totalorder %s25, 1
    %p237 = por %p235, %p236
    %p239 = scmp.ne.s32.totalorder %s224, %s238
    %p240 = scmp.eq.s32.totalorder %s25, 0
    %p241 = por %p239, %p240
    %s243 = sadd.s32 %s242, 1
    %p246 = scmp.eq.s32.totalorder %s19, 1
    %p247 = scmp.ne.s32.totalorder %s242, %s244
    %p248 = scmp.eq.s32.totalorder %s19, 0
    %p249 = por %p247, %p248
    %p250 = scmp.ne.s32.totalorder %s242, %s244
    %p251 = scmp.eq.s32.totalorder %s24, 1
    %p252 = por %p250, %p251
    %p253 = scmp.ne.s32.totalorder %s244, %s245
    %p254 = scmp.eq.s32.totalorder %s24, 0
    %p255 = por %p253, %p254
    %p256 = scmp.ne.s32.totalorder %s244, %s245
    %p257 = scmp.eq.s32.totalorder %s25, 1
    %p258 = por %p256, %p257
    %p260 = scmp.ne.s32.totalorder %s245, %s259
    %p261 = scmp.eq.s32.totalorder %s25, 0
    %p262 = por %p260, %p261
    %s264 = sadd.s32 %s263, 1
    %p267 = scmp.eq.s32.totalorder %s19, 1
    %p268 = scmp.ne.s32.totalorder %s263, %s265
    %p269 = scmp.eq.s32.totalorder %s19, 0
    %p270 = por %p268, %p269
    %p271 = scmp.ne.s32.totalorder %s263, %s265
    %p272 = scmp.eq.s32.totalorder %s24, 1
    %p273 = por %p271, %p272
    %p274 = scmp.ne.s32.totalorder %s265, %s266
    %p275 = scmp.eq.s32.totalorder %s24, 0
    %p276 = por %p274, %p275
    %p277 = scmp.ne.s32.totalorder %s265, %s266
    %p278 = scmp.eq.s32.totalorder %s25, 1
    %p279 = por %p277, %p278
    %p281 = scmp.ne.s32.totalorder %s266, %s280
    %p282 = scmp.eq.s32.totalorder %s25, 0
    %p283 = por %p281, %p282
    %s285 = sadd.s32 %s284, 1
    %p288 = scmp.eq.s32.totalorder %s19, 1
    %p289 = scmp.ne.s32.totalorder %s284, %s286
    %p290 = scmp.eq.s32.totalorder %s19, 0
    %p291 = por %p289, %p290
    %p292 = scmp.ne.s32.totalorder %s284, %s286
    %p293 = scmp.eq.s32.totalorder %s24, 1
    %p294 = por %p292, %p293
    %p295 = scmp.ne.s32.totalorder %s286, %s287
    %p296 = scmp.eq.s32.totalorder %s24, 0
    %p297 = por %p295, %p296
    %p298 = scmp.ne.s32.totalorder %s286, %s287
    %p299 = scmp.eq.s32.totalorder %s25, 1
    %p300 = por %p298, %p299
    %p302 = scmp.ne.s32.totalorder %s287, %s301
    %p303 = scmp.eq.s32.totalorder %s25, 0
    %p304 = por %p302, %p303
    %s305 = ssub.s32 %s19, %s26
    %p306 = scmp.eq.s32.totalorder %s305, 0
    %s308 = sadd.s32 %s307, 1
    %s309 = scalar_select %p306, %s307, %s308
    %p312 = pneg %p306
    %p313 = scmp.eq.s32.totalorder %s19, 1
    %p314 = por %p312, %p313
    %p315 = scmp.ne.s32.totalorder %s307, %s310
    %p316 = scmp.eq.s32.totalorder %s19, 0
    %p317 = por %p315, %p316
    %p318 = scmp.ne.s32.totalorder %s307, %s310
    %p319 = scmp.eq.s32.totalorder %s24, 1
    %p320 = por %p318, %p319
    %p321 = scmp.ne.s32.totalorder %s310, %s311
    %p322 = scmp.eq.s32.totalorder %s24, 0
    %p323 = por %p321, %p322
    %p324 = scmp.ne.s32.totalorder %s310, %s311
    %p325 = scmp.eq.s32.totalorder %s25, 1
    %p326 = por %p324, %p325
    %p328 = scmp.ne.s32.totalorder %s311, %s327
    %p329 = scmp.eq.s32.totalorder %s25, 0
    %p330 = por %p328, %p329
    %p331 = scmp.le.s32.totalorder 1, %s19
    %p332 = scmp.lt.s32.totalorder %s19, 3
    %p333 = pnand %p331, %p332
    %p334 = pneg %p333
    // Predicated region
    $region9: #{autoencoder3_forward.1} parent=5 // pred_check
      _
    $region10: #{autoencoder3_forward.1} parent=5 // pred_check_branch
      %336 = sbr.rel (%p333) target = $region12
    $region11: #{autoencoder3_forward.1} parent=5 // pred_region
      %s337 = ssub.s32 %s19, 1
      // Predicated region
      $region13: #{autoencoder3_forward.1} parent=11 // pred_check
        %p338 = pneg %p66
      $region14: #{autoencoder3_forward.1} parent=11 // pred_check_branch
        %340 = sbr.rel (%p338) target = $region16
      $region15: #{autoencoder3_forward.1} parent=11 // pred_region
        _
      $region16: #{autoencoder3_forward.1} parent=11 // pred_fallthru
        _
      // Predicated region
      $region17: #{autoencoder3_forward.1} parent=11 // pred_check
        %p341 = pneg %p87
      $region18: #{autoencoder3_forward.1} parent=11 // pred_check_branch
        %343 = sbr.rel (%p341) target = $region20
      $region19: #{autoencoder3_forward.1} parent=11 // pred_region
        _
      $region20: #{autoencoder3_forward.1} parent=11 // pred_fallthru
        _
      // Predicated region
      $region21: #{autoencoder3_forward.1} parent=11 // pred_check
        %p344 = pneg %p108
      $region22: #{autoencoder3_forward.1} parent=11 // pred_check_branch
        %346 = sbr.rel (%p344) target = $region24
      $region23: #{autoencoder3_forward.1} parent=11 // pred_region
        _
      $region24: #{autoencoder3_forward.1} parent=11 // pred_fallthru
        _
      // Predicated region
      $region25: #{autoencoder3_forward.1} parent=11 // pred_check
        %p347 = pneg %p129
      $region26: #{autoencoder3_forward.1} parent=11 // pred_check_branch
        %349 = sbr.rel (%p347) target = $region28
      $region27: #{autoencoder3_forward.1} parent=11 // pred_region
        _
      $region28: #{autoencoder3_forward.1} parent=11 // pred_fallthru
        _
      // Predicated region
      $region29: #{autoencoder3_forward.1} parent=11 // pred_check
        %p350 = pneg %p150
      $region30: #{autoencoder3_forward.1} parent=11 // pred_check_branch
        %352 = sbr.rel (%p350) target = $region32
      $region31: #{autoencoder3_forward.1} parent=11 // pred_region
        _
      $region32: #{autoencoder3_forward.1} parent=11 // pred_fallthru
        _
      // Predicated region
      $region33: #{autoencoder3_forward.1} parent=11 // pred_check
        %p353 = pneg %p171
      $region34: #{autoencoder3_forward.1} parent=11 // pred_check_branch
        %355 = sbr.rel (%p353) target = $region36
      $region35: #{autoencoder3_forward.1} parent=11 // pred_region
        _
      $region36: #{autoencoder3_forward.1} parent=11 // pred_fallthru
        _
      // Predicated region
      $region37: #{autoencoder3_forward.1} parent=11 // pred_check
        %p356 = pneg %p192
      $region38: #{autoencoder3_forward.1} parent=11 // pred_check_branch
        %358 = sbr.rel (%p356) target = $region40
      $region39: #{autoencoder3_forward.1} parent=11 // pred_region
        _
      $region40: #{autoencoder3_forward.1} parent=11 // pred_fallthru
        _
      // Predicated region
      $region41: #{autoencoder3_forward.1} parent=11 // pred_check
        %p359 = pneg %p213
      $region42: #{autoencoder3_forward.1} parent=11 // pred_check_branch
        %361 = sbr.rel (%p359) target = $region44
      $region43: #{autoencoder3_forward.1} parent=11 // pred_region
        _
      $region44: #{autoencoder3_forward.1} parent=11 // pred_fallthru
        _
      // Predicated region
      $region45: #{autoencoder3_forward.1} parent=11 // pred_check
        %p362 = pneg %p234
      $region46: #{autoencoder3_forward.1} parent=11 // pred_check_branch
        %364 = sbr.rel (%p362) target = $region48
      $region47: #{autoencoder3_forward.1} parent=11 // pred_region
        _
      $region48: #{autoencoder3_forward.1} parent=11 // pred_fallthru
        _
      // Predicated region
      $region49: #{autoencoder3_forward.1} parent=11 // pred_check
        %p365 = pneg %p255
      $region50: #{autoencoder3_forward.1} parent=11 // pred_check_branch
        %367 = sbr.rel (%p365) target = $region52
      $region51: #{autoencoder3_forward.1} parent=11 // pred_region
        _
      $region52: #{autoencoder3_forward.1} parent=11 // pred_fallthru
        _
      // Predicated region
      $region53: #{autoencoder3_forward.1} parent=11 // pred_check
        %p368 = pneg %p276
      $region54: #{autoencoder3_forward.1} parent=11 // pred_check_branch
        %370 = sbr.rel (%p368) target = $region56
      $region55: #{autoencoder3_forward.1} parent=11 // pred_region
        _
      $region56: #{autoencoder3_forward.1} parent=11 // pred_fallthru
        _
      // Predicated region
      $region57: #{autoencoder3_forward.1} parent=11 // pred_check
        %p371 = pneg %p297
      $region58: #{autoencoder3_forward.1} parent=11 // pred_check_branch
        %373 = sbr.rel (%p371) target = $region60
      $region59: #{autoencoder3_forward.1} parent=11 // pred_region
        _
      $region60: #{autoencoder3_forward.1} parent=11 // pred_fallthru
        _
    $region12: #{autoencoder3_forward.1} parent=5 // pred_fallthru
      _
    %p374 = scmp.lt.s32.totalorder %s19, 2
    // Predicated region
    $region61: #{autoencoder3_forward.1} parent=5 // pred_check
      %p375 = pneg %p374
    $region62: #{autoencoder3_forward.1} parent=5 // pred_check_branch
      %377 = sbr.rel (%p375) target = $region64
    $region63: #{autoencoder3_forward.1} parent=5 // pred_region
      // Predicated region
      $region65: #{autoencoder3_forward.1} parent=63 // pred_check
        %p378 = pneg %p39
      $region66: #{autoencoder3_forward.1} parent=63 // pred_check_branch
        %380 = sbr.rel (%p378) target = $region68
      $region67: #{autoencoder3_forward.1} parent=63 // pred_region
        %s381 = smul.u32 32, %s19
        %p382 = scmp.lt.s32.totalorder %s381, 63
        %s383 = scalar_select %p382, %s381, 63
        %s384 = smul.addr %s383, 8
        %s385 = scalar_lea.vmem %s0, %s384
        %s386 = smul.u32 32, %s19
      $region68: #{autoencoder3_forward.1} parent=63 // pred_fallthru
        _
    $region64: #{autoencoder3_forward.1} parent=5 // pred_fallthru
      _
    %p387 = scmp.le.s32.totalorder 1, %s19
    %p388 = scmp.lt.s32.totalorder %s19, 3
    %p389 = pnand %p387, %p388
    %p390 = pneg %p389
    // Predicated region
    $region69: #{autoencoder3_forward.1} parent=5 // pred_check
      _
    $region70: #{autoencoder3_forward.1} parent=5 // pred_check_branch
      %392 = sbr.rel (%p389) target = $region72
    $region71: #{autoencoder3_forward.1} parent=5 // pred_region
      %s393 = ssub.s32 %s19, 1
      %s394 = smul.u32 32, %s24
      %p395 = scmp.lt.s32.totalorder %s394, 63
      %s396 = scalar_select %p395, %s394, 63
      %s397 = smul.addr %s396, 8
      %s398 = scalar_lea.vmem %s0, %s397
      %p399 = pneg %p45
      %p400 = pneg %p42
      %p401 = pneg %p66
      %p402 = pneg %p63
      %p403 = pneg %p87
      %p404 = pneg %p84
      %p405 = pneg %p108
      %p406 = pneg %p105
      %p407 = pneg %p129
      %p408 = pneg %p126
      %p409 = pneg %p150
      %p410 = pneg %p147
      %p411 = pneg %p171
      %p412 = pneg %p168
      %p413 = pneg %p192
      %p414 = pneg %p189
      %p415 = pneg %p213
      %p416 = pneg %p210
      %p417 = pneg %p234
      %p418 = pneg %p231
      %p419 = pneg %p255
      %p420 = pneg %p252
      %p421 = pneg %p276
      %p422 = pneg %p273
      %p423 = pneg %p297
      %p424 = pneg %p294
      %p425 = pneg %p323
      %p426 = pneg %p320
      %s427 = smul.u32 32, %s24
      %p428 = scmp.lt.s32.totalorder %s427, 63
      %s429 = scalar_select %p428, %s427, 63
      %s430 = smul.addr %s429, 8
      %s431 = scalar_lea.vmem %s13, %s430
      %s432 = smul.u32 32, %s24
      %p433 = scmp.lt.s32.totalorder %s432, 63
      %s434 = scalar_select %p433, %s432, 63
      %s435 = smul.addr %s434, 8
      %s436 = scalar_lea.vmem %s0, %s435
      %s437 = smul.u32 32, %s24
      %s438 = smul.u32 32, %s24
      %p439 = scmp.lt.s32.totalorder %s438, 63
      %s440 = scalar_select %p439, %s438, 63
      %s441 = smul.addr %s440, 8
      %s442 = scalar_lea.vmem %s13, %s441
      %s443 = smul.u32 32, %s24
      %v444 = vld [vmem:[%s436] sm:$0xff]
      %v445 = vld [vmem:[%s436 + $0x8] sm:$0xff]
      %v446 = vld [vmem:[%s436 + $0x10] sm:$0xff]
      %v447 = vld [vmem:[%s436 + $0x18] sm:$0xff]
      %v448 = vld [vmem:[%s436 + $0x20] sm:$0xff]
      %v449 = vld [vmem:[%s436 + $0x28] sm:$0xff]
      %v450 = vld [vmem:[%s436 + $0x30] sm:$0xff]
      %v451 = vld [vmem:[%s436 + $0x38] sm:$0xff]
      %v452 = vld [vmem:[%s436 + $0x40] sm:$0xff]
      %v453 = vld [vmem:[%s436 + $0x48] sm:$0xff]
      %v454 = vld [vmem:[%s436 + $0x50] sm:$0xff]
      %v455 = vld [vmem:[%s436 + $0x58] sm:$0xff]
      %v456 = vld [vmem:[%s436 + $0x60] sm:$0xff]
      %v457 = vld [vmem:[%s436 + $0x68] sm:$0xff]
      %v458 = vld [vmem:[%s436 + $0x70] sm:$0xff]
      %v459 = vld [vmem:[%s436 + $0x78] sm:$0xff]
      %v460 = vld [vmem:[%s436 + $0x80] sm:$0xff]
      %v461 = vld [vmem:[%s436 + $0x88] sm:$0xff]
      %v462 = vld [vmem:[%s436 + $0x90] sm:$0xff]
      %v463 = vld [vmem:[%s436 + $0x98] sm:$0xff]
      %v464 = vld [vmem:[%s436 + $0xa0] sm:$0xff]
      %v465 = vld [vmem:[%s436 + $0xa8] sm:$0xff]
      %v466 = vld [vmem:[%s436 + $0xb0] sm:$0xff]
      %v467 = vld [vmem:[%s436 + $0xb8] sm:$0xff]
      %v468 = vld [vmem:[%s436 + $0xc0] sm:$0xff]
      %v469 = vld [vmem:[%s436 + $0xc8] sm:$0xff]
      %v470 = vld [vmem:[%s436 + $0xd0] sm:$0xff]
      %v471 = vld [vmem:[%s436 + $0xd8] sm:$0xff]
      %v472 = vld [vmem:[%s436 + $0xe0] sm:$0xff]
      %v473 = vld [vmem:[%s436 + $0xe8] sm:$0xff]
      %v474 = vld [vmem:[%s436 + $0xf0] sm:$0xff]
      %v475 = vld [vmem:[%s436 + $0xf8] sm:$0xff]
      %v476 = vld [vmem:[%s1] sm:$0xff]
      %v477 = vld [vmem:[%s1 + $0x8] sm:$0xff]
      %v478 = vld [vmem:[%s1 + $0x10] sm:$0xff]
      %v479 = vld [vmem:[%s1 + $0x18] sm:$0xff]
      %v480 = vld [vmem:[%s2] sm:$0xff]
      %v481 = vld [vmem:[%s2 + $0x8] sm:$0xff]
      %v482 = vld [vmem:[%s2 + $0x10] sm:$0xff]
      %v483 = vld [vmem:[%s2 + $0x18] sm:$0xff]
      %485 = vset.pattern.permute.xlu0 0
      %486 = vperm.xlu0 %485, %v480
      %v487 = vpop.permute.xlu0 %486
      %490 = vset.pattern.permute.xlu0 0
      %491 = vperm.xlu0 %490, %v481
      %v492 = vpop.permute.xlu0 %491
      %495 = vset.pattern.permute.xlu0 0
      %496 = vperm.xlu0 %495, %v482
      %v497 = vpop.permute.xlu0 %496
      %500 = vset.pattern.permute.xlu0 0
      %501 = vperm.xlu0 %500, %v483
      %v502 = vpop.permute.xlu0 %501
      %vm504 = vcmask 220160
      %v506 = vsel %vm504, %v476, 0
      %v509 = vsel %vm504, %v477, 0
      %v512 = vsel %vm504, %v478, 0
      %v515 = vsel %vm504, %v479, 0
      %v518 = vsel %vm504, %v444, 0
      %v521 = vsel %vm504, %v445, 0
      %v524 = vsel %vm504, %v446, 0
      %v527 = vsel %vm504, %v447, 0
      %v530 = vsel %vm504, %v448, 0
      %v533 = vsel %vm504, %v449, 0
      %v536 = vsel %vm504, %v450, 0
      %v539 = vsel %vm504, %v451, 0
      %v542 = vsel %vm504, %v452, 0
      %v545 = vsel %vm504, %v453, 0
      %v548 = vsel %vm504, %v454, 0
      %v551 = vsel %vm504, %v455, 0
      %v554 = vsel %vm504, %v456, 0
      %v557 = vsel %vm504, %v457, 0
      %v560 = vsel %vm504, %v458, 0
      %v563 = vsel %vm504, %v459, 0
      %v566 = vsel %vm504, %v460, 0
      %v569 = vsel %vm504, %v461, 0
      %v572 = vsel %vm504, %v462, 0
      %v575 = vsel %vm504, %v463, 0
      %v578 = vsel %vm504, %v464, 0
      %v581 = vsel %vm504, %v465, 0
      %v584 = vsel %vm504, %v466, 0
      %v587 = vsel %vm504, %v467, 0
      %v590 = vsel %vm504, %v468, 0
      %v593 = vsel %vm504, %v469, 0
      %v596 = vsel %vm504, %v470, 0
      %v599 = vsel %vm504, %v471, 0
      %v602 = vsel %vm504, %v472, 0
      %v605 = vsel %vm504, %v473, 0
      %v608 = vsel %vm504, %v474, 0
      %v611 = vsel %vm504, %v475, 0
      %613 = vmatprep.subr.mxu0 0.0
      %614 = vmatpush1.xpose.msra.mxu0 %v563
      %615 = vmatprep.subr.mxu0 0.0
      %616 = vmatpush1.xpose.msra.mxu0 %v560
      %617 = vmatprep.subr.mxu0 0.0
      %618 = vmatpush1.xpose.msra.mxu0 %v557
      %619 = vmatprep.subr.mxu0 0.0
      %620 = vmatpush1.xpose.msra.mxu0 %v554
      %621 = vmatprep.subr.mxu0 0.0
      %622 = vmatpush1.xpose.msra.mxu0 %v551
      %623 = vmatprep.subr.mxu0 0.0
      %624 = vmatpush1.xpose.msra.mxu0 %v548
      %625 = vmatprep.subr.mxu0 0.0
      %626 = vmatpush1.xpose.msra.mxu0 %v545
      %627 = vmatprep.subr.mxu0 0.0
      %628 = vmatpush1.xpose.msra.mxu0 %v542
      %629 = vmatprep.subr.mxu0 0.0
      %630 = vmatpush1.xpose.msra.mxu0 %v539
      %631 = vmatprep.subr.mxu0 0.0
      %632 = vmatpush1.xpose.msra.mxu0 %v536
      %633 = vmatprep.subr.mxu0 0.0
      %634 = vmatpush1.xpose.msra.mxu0 %v533
      %635 = vmatprep.subr.mxu0 0.0
      %636 = vmatpush1.xpose.msra.mxu0 %v530
      %637 = vmatprep.subr.mxu0 0.0
      %638 = vmatpush1.xpose.msra.mxu0 %v527
      %639 = vmatprep.subr.mxu0 0.0
      %640 = vmatpush1.xpose.msra.mxu0 %v524
      %641 = vmatprep.subr.mxu0 0.0
      %642 = vmatpush1.xpose.msra.mxu0 %v521
      %643 = vmatprep.subr.mxu0 0.0
      %644 = vmatpush1.xpose.msra.mxu0 %v518
      %645 = vmatprep.subr.mxu0 0.0
      %646 = vmatpush2.xpose.msra.mxu0 %v611
      %647 = vmatprep.subr.mxu0 0.0
      %648 = vmatpush2.xpose.msra.mxu0 %v608
      %649 = vmatprep.subr.mxu0 0.0
      %650 = vmatpush2.xpose.msra.mxu0 %v605
      %651 = vmatprep.subr.mxu0 0.0
      %652 = vmatpush2.xpose.msra.mxu0 %v602
      %653 = vmatprep.subr.mxu0 0.0
      %654 = vmatpush2.xpose.msra.mxu0 %v599
      %655 = vmatprep.subr.mxu0 0.0
      %656 = vmatpush2.xpose.msra.mxu0 %v596
      %657 = vmatprep.subr.mxu0 0.0
      %658 = vmatpush2.xpose.msra.mxu0 %v593
      %659 = vmatprep.subr.mxu0 0.0
      %660 = vmatpush2.xpose.msra.mxu0 %v590
      %661 = vmatprep.subr.mxu0 0.0
      %662 = vmatpush2.xpose.msra.mxu0 %v587
      %663 = vmatprep.subr.mxu0 0.0
      %664 = vmatpush2.xpose.msra.mxu0 %v584
      %665 = vmatprep.subr.mxu0 0.0
      %666 = vmatpush2.xpose.msra.mxu0 %v581
      %667 = vmatprep.subr.mxu0 0.0
      %668 = vmatpush2.xpose.msra.mxu0 %v578
      %669 = vmatprep.subr.mxu0 0.0
      %670 = vmatpush2.xpose.msra.mxu0 %v575
      %671 = vmatprep.subr.mxu0 0.0
      %672 = vmatpush2.xpose.msra.mxu0 %v572
      %673 = vmatprep.subr.mxu0 0.0
      %674 = vmatpush2.xpose.msra.mxu0 %v569
      %675 = vmatprep.subr.mxu0 0.0
      %676 = vmatpush2.xpose.msra.mxu0 %v566
      %677 = vmatprep.mubr.f32.mxu0 0.0
      %678 = vmatmul.mubr.f32.gmra.mxu0 %v506
      %v679 = vpop.f32.mrf.mxu0
      %v680 = vadd.f32 %v487, %v679
      %v681 = vpop.f32.mrf.mxu0
      %v682 = vadd.f32 %v487, %v681
      %683 = vmatprep.mubr.f32.mxu0 0.0
      %684 = vmatmul.mubr.f32.gmra.mxu0 %v509
      %v685 = vpop.f32.mrf.mxu0
      %v686 = vadd.f32 %v492, %v685
      %v687 = vpop.f32.mrf.mxu0
      %v688 = vadd.f32 %v492, %v687
      %689 = vmatprep.mubr.f32.mxu0 0.0
      %690 = vmatmul.mubr.f32.gmra.mxu0 %v512
      %v691 = vpop.f32.mrf.mxu0
      %v692 = vadd.f32 %v497, %v691
      %v693 = vpop.f32.mrf.mxu0
      %v694 = vadd.f32 %v497, %v693
      %695 = vmatprep.mubr.f32.mxu0 0.0
      %696 = vmatmul.mubr.f32.gmra.mxu0 %v515
      %v697 = vpop.f32.mrf.mxu0
      %v698 = vadd.f32 %v502, %v697
      %v699 = vpop.f32.mrf.mxu0
      %v700 = vadd.f32 %v502, %v699
      %701 = vdwg.mxu0
      %v702 = vmin.f32 %v680, 20.0
      %v703 = vmin.f32 %v682, 20.0
      %v704 = vmin.f32 %v686, 20.0
      %v705 = vmin.f32 %v688, 20.0
      %v706 = vmin.f32 %v692, 20.0
      %v707 = vmin.f32 %v694, 20.0
      %v708 = vmin.f32 %v698, 20.0
      %v709 = vmin.f32 %v700, 20.0
      %v710 = vmul.f32 %v702, 1.442695
      %v711 = vpow.pop %v710
      %v712 = vmul.f32 %v703, 1.442695
      %v713 = vpow.pop %v712
      %v714 = vmul.f32 %v704, 1.442695
      %v715 = vpow.pop %v714
      %v716 = vmul.f32 %v705, 1.442695
      %v717 = vpow.pop %v716
      %v718 = vmul.f32 %v706, 1.442695
      %v719 = vpow.pop %v718
      %v720 = vmul.f32 %v707, 1.442695
      %v721 = vpow.pop %v720
      %v722 = vmul.f32 %v708, 1.442695
      %v723 = vpow.pop %v722
      %v724 = vmul.f32 %v709, 1.442695
      %v725 = vpow.pop %v724
      %v726 = vadd.f32 %v711, 1.0
      %v727 = vadd.f32 %v713, 1.0
      %v728 = vadd.f32 %v715, 1.0
      %v729 = vadd.f32 %v717, 1.0
      %v730 = vadd.f32 %v719, 1.0
      %v731 = vadd.f32 %v721, 1.0
      %v732 = vadd.f32 %v723, 1.0
      %v733 = vadd.f32 %v725, 1.0
      %v734 = vmul.f32 %v726, %v726
      %v735 = vmul.f32 %v727, %v727
      %v736 = vmul.f32 %v728, %v728
      %v737 = vmul.f32 %v729, %v729
      %v738 = vmul.f32 %v730, %v730
      %v739 = vmul.f32 %v731, %v731
      %v740 = vmul.f32 %v732, %v732
      %v741 = vmul.f32 %v733, %v733
      %v742 = vsub.f32 %v734, 1.0
      %v743 = vsub.f32 %v735, 1.0
      %v744 = vsub.f32 %v736, 1.0
      %v745 = vsub.f32 %v737, 1.0
      %v746 = vsub.f32 %v738, 1.0
      %v747 = vsub.f32 %v739, 1.0
      %v748 = vsub.f32 %v740, 1.0
      %v749 = vsub.f32 %v741, 1.0
      %v750 = vadd.f32 %v734, 1.0
      %v751 = vadd.f32 %v735, 1.0
      %v752 = vadd.f32 %v736, 1.0
      %v753 = vadd.f32 %v737, 1.0
      %v754 = vadd.f32 %v738, 1.0
      %v755 = vadd.f32 %v739, 1.0
      %v756 = vadd.f32 %v740, 1.0
      %v757 = vadd.f32 %v741, 1.0
      %v758 = vrcp.pop %v750
      %v759 = vrcp.pop %v751
      %v760 = vrcp.pop %v752
      %v761 = vrcp.pop %v753
      %v762 = vrcp.pop %v754
      %v763 = vrcp.pop %v755
      %v764 = vrcp.pop %v756
      %v765 = vrcp.pop %v757
      %v766 = vmul.f32 %v742, %v758
      %v767 = vmul.f32 %v743, %v759
      %v768 = vmul.f32 %v744, %v760
      %v769 = vmul.f32 %v745, %v761
      %v770 = vmul.f32 %v746, %v762
      %v771 = vmul.f32 %v747, %v763
      %v772 = vmul.f32 %v748, %v764
      %v773 = vmul.f32 %v749, %v765
      %vm774 = vcmp.gt.f32.partialorder %v680, 20.0
      %vm775 = vcmp.gt.f32.partialorder %v682, 20.0
      %vm776 = vcmp.gt.f32.partialorder %v686, 20.0
      %vm777 = vcmp.gt.f32.partialorder %v688, 20.0
      %vm778 = vcmp.gt.f32.partialorder %v692, 20.0
      %vm779 = vcmp.gt.f32.partialorder %v694, 20.0
      %vm780 = vcmp.gt.f32.partialorder %v698, 20.0
      %vm781 = vcmp.gt.f32.partialorder %v700, 20.0
      %v782 = vmul.f32 %v680, %v766
      %v783 = vmul.f32 %v682, %v767
      %v784 = vmul.f32 %v686, %v768
      %v785 = vmul.f32 %v688, %v769
      %v786 = vmul.f32 %v692, %v770
      %v787 = vmul.f32 %v694, %v771
      %v788 = vmul.f32 %v698, %v772
      %v789 = vmul.f32 %v700, %v773
      %v790 = vsel %vm774, %v680, %v782
      %v791 = vsel %vm775, %v682, %v783
      %v792 = vsel %vm776, %v686, %v784
      %v793 = vsel %vm777, %v688, %v785
      %v794 = vsel %vm778, %v692, %v786
      %v795 = vsel %vm779, %v694, %v787
      %v796 = vsel %vm780, %v698, %v788
      %v797 = vsel %vm781, %v700, %v789
      %v798 = vld [vmem:[%s3] sm:$0xff]
      %v799 = vld [vmem:[%s3 + $0x8] sm:$0xff]
      %v800 = vld [vmem:[%s4] sm:$0xff]
      %v801 = vld [vmem:[%s4 + $0x8] sm:$0xff]
      %803 = vset.pattern.permute.xlu0 0
      %804 = vperm.xlu0 %803, %v800
      %v805 = vpop.permute.xlu0 %804
      %808 = vset.pattern.permute.xlu0 0
      %809 = vperm.xlu0 %808, %v801
      %v810 = vpop.permute.xlu0 %809
      %vm812 = vcmask 261120
      %v814 = vsel %vm812, %v798, 0
      %v817 = vsel %vm812, %v799, 0
      %819 = vmatprep.subr.mxu0 0.0
      %820 = vmatpush1.msra.mxu0 0.0
      %821 = vmatprep.subr.mxu0 0.0
      %822 = vmatpush1.msra.mxu0 0.0
      %823 = vmatprep.subr.mxu0 0.0
      %824 = vmatpush1.msra.mxu0 0.0
      %825 = vmatprep.subr.mxu0 0.0
      %826 = vmatpush1.msra.mxu0 0.0
      %827 = vmatprep.subr.mxu0 0.0
      %828 = vmatpush1.msra.mxu0 0.0
      %829 = vmatprep.subr.mxu0 0.0
      %830 = vmatpush1.msra.mxu0 0.0
      %831 = vmatprep.subr.mxu0 0.0
      %832 = vmatpush1.msra.mxu0 0.0
      %833 = vmatprep.subr.mxu0 0.0
      %834 = vmatpush1.msra.mxu0 0.0
      %835 = vmatprep.subr.mxu0 0.0
      %836 = vmatpush1.msra.mxu0 0.0
      %837 = vmatprep.subr.mxu0 0.0
      %838 = vmatpush1.msra.mxu0 0.0
      %839 = vmatprep.subr.mxu0 0.0
      %840 = vmatpush1.msra.mxu0 0.0
      %841 = vmatprep.subr.mxu0 0.0
      %842 = vmatpush1.msra.mxu0 0.0
      %843 = vmatprep.subr.mxu0 %v797
      %844 = vmatpush1.msra.mxu0 %v796
      %845 = vmatprep.subr.mxu0 %v795
      %846 = vmatpush1.msra.mxu0 %v794
      %847 = vmatprep.subr.mxu0 %v793
      %848 = vmatpush1.msra.mxu0 %v792
      %849 = vmatprep.subr.mxu0 %v791
      %850 = vmatpush1.msra.mxu0 %v790
      %851 = vmatprep.subr.mxu0 0.0
      %852 = vmatpush2.msra.mxu0 0.0
      %853 = vmatprep.subr.mxu0 0.0
      %854 = vmatpush2.msra.mxu0 0.0
      %855 = vmatprep.subr.mxu0 0.0
      %856 = vmatpush2.msra.mxu0 0.0
      %857 = vmatprep.subr.mxu0 0.0
      %858 = vmatpush2.msra.mxu0 0.0
      %859 = vmatprep.subr.mxu0 0.0
      %860 = vmatpush2.msra.mxu0 0.0
      %861 = vmatprep.subr.mxu0 0.0
      %862 = vmatpush2.msra.mxu0 0.0
      %863 = vmatprep.subr.mxu0 0.0
      %864 = vmatpush2.msra.mxu0 0.0
      %865 = vmatprep.subr.mxu0 0.0
      %866 = vmatpush2.msra.mxu0 0.0
      %867 = vmatprep.subr.mxu0 0.0
      %868 = vmatpush2.msra.mxu0 0.0
      %869 = vmatprep.subr.mxu0 0.0
      %870 = vmatpush2.msra.mxu0 0.0
      %871 = vmatprep.subr.mxu0 0.0
      %872 = vmatpush2.msra.mxu0 0.0
      %873 = vmatprep.subr.mxu0 0.0
      %874 = vmatpush2.msra.mxu0 0.0
      %875 = vmatprep.subr.mxu0 0.0
      %876 = vmatpush2.msra.mxu0 0.0
      %877 = vmatprep.subr.mxu0 0.0
      %878 = vmatpush2.msra.mxu0 0.0
      %879 = vmatprep.subr.mxu0 0.0
      %880 = vmatpush2.msra.mxu0 0.0
      %881 = vmatprep.subr.mxu0 0.0
      %882 = vmatpush2.msra.mxu0 0.0
      %883 = vmatprep.mubr.f32.mxu0 0.0
      %884 = vmatmul.mubr.f32.gmra.mxu0 %v814
      %v885 = vpop.f32.mrf.mxu0
      %v886 = vadd.f32 %v805, %v885
      %v887 = vpop.f32.mrf.mxu0
      %v888 = vadd.f32 %v805, %v887
      %889 = vmatprep.mubr.f32.mxu0 0.0
      %890 = vmatmul.mubr.f32.gmra.mxu0 %v817
      %v891 = vpop.f32.mrf.mxu0
      %v892 = vadd.f32 %v810, %v891
      %v893 = vpop.f32.mrf.mxu0
      %v894 = vadd.f32 %v810, %v893
      %895 = vdwg.mxu0
      %v896 = vmin.f32 %v886, 20.0
      %v897 = vmin.f32 %v888, 20.0
      %v898 = vmin.f32 %v892, 20.0
      %v899 = vmin.f32 %v894, 20.0
      %v900 = vmul.f32 %v896, 1.442695
      %v901 = vpow.pop %v900
      %v902 = vmul.f32 %v897, 1.442695
      %v903 = vpow.pop %v902
      %v904 = vmul.f32 %v898, 1.442695
      %v905 = vpow.pop %v904
      %v906 = vmul.f32 %v899, 1.442695
      %v907 = vpow.pop %v906
      %v908 = vadd.f32 %v901, 1.0
      %v909 = vadd.f32 %v903, 1.0
      %v910 = vadd.f32 %v905, 1.0
      %v911 = vadd.f32 %v907, 1.0
      %v912 = vmul.f32 %v908, %v908
      %v913 = vmul.f32 %v909, %v909
      %v914 = vmul.f32 %v910, %v910
      %v915 = vmul.f32 %v911, %v911
      %v916 = vsub.f32 %v912, 1.0
      %v917 = vsub.f32 %v913, 1.0
      %v918 = vsub.f32 %v914, 1.0
      %v919 = vsub.f32 %v915, 1.0
      %v920 = vadd.f32 %v912, 1.0
      %v921 = vadd.f32 %v913, 1.0
      %v922 = vadd.f32 %v914, 1.0
      %v923 = vadd.f32 %v915, 1.0
      %v924 = vrcp.pop %v920
      %v925 = vrcp.pop %v921
      %v926 = vrcp.pop %v922
      %v927 = vrcp.pop %v923
      %v928 = vmul.f32 %v916, %v924
      %v929 = vmul.f32 %v917, %v925
      %v930 = vmul.f32 %v918, %v926
      %v931 = vmul.f32 %v919, %v927
      %vm932 = vcmp.gt.f32.partialorder %v886, 20.0
      %vm933 = vcmp.gt.f32.partialorder %v888, 20.0
      %vm934 = vcmp.gt.f32.partialorder %v892, 20.0
      %vm935 = vcmp.gt.f32.partialorder %v894, 20.0
      %v936 = vmul.f32 %v886, %v928
      %v937 = vmul.f32 %v888, %v929
      %v938 = vmul.f32 %v892, %v930
      %v939 = vmul.f32 %v894, %v931
      %v940 = vsel %vm932, %v886, %v936
      %v941 = vsel %vm933, %v888, %v937
      %v942 = vsel %vm934, %v892, %v938
      %v943 = vsel %vm935, %v894, %v939
      %v944 = vld [vmem:[%s5] sm:$0xff]
      %v945 = vld [vmem:[%s6] sm:$0xff]
      %947 = vset.pattern.permute.xlu0 0
      %948 = vperm.xlu0 %947, %v945
      %v949 = vpop.permute.xlu0 %948
      %vm951 = vcmask 130048
      %v953 = vsel %vm951, %v944, 0
      %955 = vmatprep.subr.mxu0 0.0
      %956 = vmatpush1.msra.mxu0 0.0
      %957 = vmatprep.subr.mxu0 0.0
      %958 = vmatpush1.msra.mxu0 0.0
      %959 = vmatprep.subr.mxu0 0.0
      %960 = vmatpush1.msra.mxu0 0.0
      %961 = vmatprep.subr.mxu0 0.0
      %962 = vmatpush1.msra.mxu0 0.0
      %963 = vmatprep.subr.mxu0 0.0
      %964 = vmatpush1.msra.mxu0 0.0
      %965 = vmatprep.subr.mxu0 0.0
      %966 = vmatpush1.msra.mxu0 0.0
      %967 = vmatprep.subr.mxu0 0.0
      %968 = vmatpush1.msra.mxu0 0.0
      %969 = vmatprep.subr.mxu0 0.0
      %970 = vmatpush1.msra.mxu0 0.0
      %971 = vmatprep.subr.mxu0 0.0
      %972 = vmatpush1.msra.mxu0 0.0
      %973 = vmatprep.subr.mxu0 0.0
      %974 = vmatpush1.msra.mxu0 0.0
      %975 = vmatprep.subr.mxu0 0.0
      %976 = vmatpush1.msra.mxu0 0.0
      %977 = vmatprep.subr.mxu0 0.0
      %978 = vmatpush1.msra.mxu0 0.0
      %979 = vmatprep.subr.mxu0 0.0
      %980 = vmatpush1.msra.mxu0 0.0
      %981 = vmatprep.subr.mxu0 0.0
      %982 = vmatpush1.msra.mxu0 0.0
      %983 = vmatprep.subr.mxu0 %v943
      %984 = vmatpush1.msra.mxu0 %v942
      %985 = vmatprep.subr.mxu0 %v941
      %986 = vmatpush1.msra.mxu0 %v940
      %987 = vmatprep.subr.mxu0 0.0
      %988 = vmatpush2.msra.mxu0 0.0
      %989 = vmatprep.subr.mxu0 0.0
      %990 = vmatpush2.msra.mxu0 0.0
      %991 = vmatprep.subr.mxu0 0.0
      %992 = vmatpush2.msra.mxu0 0.0
      %993 = vmatprep.subr.mxu0 0.0
      %994 = vmatpush2.msra.mxu0 0.0
      %995 = vmatprep.subr.mxu0 0.0
      %996 = vmatpush2.msra.mxu0 0.0
      %997 = vmatprep.subr.mxu0 0.0
      %998 = vmatpush2.msra.mxu0 0.0
      %999 = vmatprep.subr.mxu0 0.0
      %1000 = vmatpush2.msra.mxu0 0.0
      %1001 = vmatprep.subr.mxu0 0.0
      %1002 = vmatpush2.msra.mxu0 0.0
      %1003 = vmatprep.subr.mxu0 0.0
      %1004 = vmatpush2.msra.mxu0 0.0
      %1005 = vmatprep.subr.mxu0 0.0
      %1006 = vmatpush2.msra.mxu0 0.0
      %1007 = vmatprep.subr.mxu0 0.0
      %1008 = vmatpush2.msra.mxu0 0.0
      %1009 = vmatprep.subr.mxu0 0.0
      %1010 = vmatpush2.msra.mxu0 0.0
      %1011 = vmatprep.subr.mxu0 0.0
      %1012 = vmatpush2.msra.mxu0 0.0
      %1013 = vmatprep.subr.mxu0 0.0
      %1014 = vmatpush2.msra.mxu0 0.0
      %1015 = vmatprep.subr.mxu0 0.0
      %1016 = vmatpush2.msra.mxu0 0.0
      %1017 = vmatprep.subr.mxu0 0.0
      %1018 = vmatpush2.msra.mxu0 0.0
      %1019 = vmatprep.mubr.f32.mxu0 0.0
      %1020 = vmatmul.mubr.f32.gmra.mxu0 %v953
      %v1021 = vpop.f32.mrf.mxu0
      %v1022 = vadd.f32 %v949, %v1021
      %v1023 = vpop.f32.mrf.mxu0
      %v1024 = vadd.f32 %v949, %v1023
      %1025 = vdwg.mxu0
      %v1026 = vmin.f32 %v1022, 20.0
      %v1027 = vmin.f32 %v1024, 20.0
      %v1028 = vmul.f32 %v1026, 1.442695
      %v1029 = vpow.pop %v1028
      %v1030 = vmul.f32 %v1027, 1.442695
      %v1031 = vpow.pop %v1030
      %v1032 = vadd.f32 %v1029, 1.0
      %v1033 = vadd.f32 %v1031, 1.0
      %v1034 = vmul.f32 %v1032, %v1032
      %v1035 = vmul.f32 %v1033, %v1033
      %v1036 = vsub.f32 %v1034, 1.0
      %v1037 = vsub.f32 %v1035, 1.0
      %v1038 = vadd.f32 %v1034, 1.0
      %v1039 = vadd.f32 %v1035, 1.0
      %v1040 = vrcp.pop %v1038
      %v1041 = vrcp.pop %v1039
      %v1042 = vmul.f32 %v1036, %v1040
      %v1043 = vmul.f32 %v1037, %v1041
      %vm1044 = vcmp.gt.f32.partialorder %v1022, 20.0
      %vm1045 = vcmp.gt.f32.partialorder %v1024, 20.0
      %v1046 = vmul.f32 %v1022, %v1042
      %v1047 = vmul.f32 %v1024, %v1043
      %v1048 = vsel %vm1044, %v1022, %v1046
      %v1049 = vsel %vm1045, %v1024, %v1047
      %v1050 = vld [vmem:[%s7] sm:$0xff]
      %v1051 = vld [vmem:[%s7 + $0x8] sm:$0xff]
      %v1052 = vld [vmem:[%s8] sm:$0xff]
      %v1053 = vld [vmem:[%s8 + $0x8] sm:$0xff]
      %1055 = vset.pattern.permute.xlu0 0
      %1056 = vperm.xlu0 %1055, %v1052
      %v1057 = vpop.permute.xlu0 %1056
      %1060 = vset.pattern.permute.xlu0 0
      %1061 = vperm.xlu0 %1060, %v1053
      %v1062 = vpop.permute.xlu0 %1061
      %vm1064 = vcmask 64512
      %v1066 = vsel %vm1064, %v1050, 0
      %v1069 = vsel %vm1064, %v1051, 0
      %1071 = vmatprep.subr.mxu0 0.0
      %1072 = vmatpush1.msra.mxu0 0.0
      %1073 = vmatprep.subr.mxu0 0.0
      %1074 = vmatpush1.msra.mxu0 0.0
      %1075 = vmatprep.subr.mxu0 0.0
      %1076 = vmatpush1.msra.mxu0 0.0
      %1077 = vmatprep.subr.mxu0 0.0
      %1078 = vmatpush1.msra.mxu0 0.0
      %1079 = vmatprep.subr.mxu0 0.0
      %1080 = vmatpush1.msra.mxu0 0.0
      %1081 = vmatprep.subr.mxu0 0.0
      %1082 = vmatpush1.msra.mxu0 0.0
      %1083 = vmatprep.subr.mxu0 0.0
      %1084 = vmatpush1.msra.mxu0 0.0
      %1085 = vmatprep.subr.mxu0 0.0
      %1086 = vmatpush1.msra.mxu0 0.0
      %1087 = vmatprep.subr.mxu0 0.0
      %1088 = vmatpush1.msra.mxu0 0.0
      %1089 = vmatprep.subr.mxu0 0.0
      %1090 = vmatpush1.msra.mxu0 0.0
      %1091 = vmatprep.subr.mxu0 0.0
      %1092 = vmatpush1.msra.mxu0 0.0
      %1093 = vmatprep.subr.mxu0 0.0
      %1094 = vmatpush1.msra.mxu0 0.0
      %1095 = vmatprep.subr.mxu0 0.0
      %1096 = vmatpush1.msra.mxu0 0.0
      %1097 = vmatprep.subr.mxu0 0.0
      %1098 = vmatpush1.msra.mxu0 0.0
      %1099 = vmatprep.subr.mxu0 0.0
      %1100 = vmatpush1.msra.mxu0 0.0
      %1101 = vmatprep.subr.mxu0 %v1049
      %1102 = vmatpush1.msra.mxu0 %v1048
      %1103 = vmatprep.subr.mxu0 0.0
      %1104 = vmatpush2.msra.mxu0 0.0
      %1105 = vmatprep.subr.mxu0 0.0
      %1106 = vmatpush2.msra.mxu0 0.0
      %1107 = vmatprep.subr.mxu0 0.0
      %1108 = vmatpush2.msra.mxu0 0.0
      %1109 = vmatprep.subr.mxu0 0.0
      %1110 = vmatpush2.msra.mxu0 0.0
      %1111 = vmatprep.subr.mxu0 0.0
      %1112 = vmatpush2.msra.mxu0 0.0
      %1113 = vmatprep.subr.mxu0 0.0
      %1114 = vmatpush2.msra.mxu0 0.0
      %1115 = vmatprep.subr.mxu0 0.0
      %1116 = vmatpush2.msra.mxu0 0.0
      %1117 = vmatprep.subr.mxu0 0.0
      %1118 = vmatpush2.msra.mxu0 0.0
      %1119 = vmatprep.subr.mxu0 0.0
      %1120 = vmatpush2.msra.mxu0 0.0
      %1121 = vmatprep.subr.mxu0 0.0
      %1122 = vmatpush2.msra.mxu0 0.0
      %1123 = vmatprep.subr.mxu0 0.0
      %1124 = vmatpush2.msra.mxu0 0.0
      %1125 = vmatprep.subr.mxu0 0.0
      %1126 = vmatpush2.msra.mxu0 0.0
      %1127 = vmatprep.subr.mxu0 0.0
      %1128 = vmatpush2.msra.mxu0 0.0
      %1129 = vmatprep.subr.mxu0 0.0
      %1130 = vmatpush2.msra.mxu0 0.0
      %1131 = vmatprep.subr.mxu0 0.0
      %1132 = vmatpush2.msra.mxu0 0.0
      %1133 = vmatprep.subr.mxu0 0.0
      %1134 = vmatpush2.msra.mxu0 0.0
      %1135 = vmatprep.mubr.f32.mxu0 0.0
      %1136 = vmatmul.mubr.f32.gmra.mxu0 %v1066
      %v1137 = vpop.f32.mrf.mxu0
      %v1138 = vadd.f32 %v1057, %v1137
      %v1139 = vpop.f32.mrf.mxu0
      %v1140 = vadd.f32 %v1057, %v1139
      %1141 = vmatprep.mubr.f32.mxu0 0.0
      %1142 = vmatmul.mubr.f32.gmra.mxu0 %v1069
      %v1143 = vpop.f32.mrf.mxu0
      %v1144 = vadd.f32 %v1062, %v1143
      %v1145 = vpop.f32.mrf.mxu0
      %v1146 = vadd.f32 %v1062, %v1145
      %1147 = vdwg.mxu0
      %v1148 = vmin.f32 %v1138, 20.0
      %v1149 = vmin.f32 %v1140, 20.0
      %v1150 = vmin.f32 %v1144, 20.0
      %v1151 = vmin.f32 %v1146, 20.0
      %v1152 = vmul.f32 %v1148, 1.442695
      %v1153 = vpow.pop %v1152
      %v1154 = vmul.f32 %v1149, 1.442695
      %v1155 = vpow.pop %v1154
      %v1156 = vmul.f32 %v1150, 1.442695
      %v1157 = vpow.pop %v1156
      %v1158 = vmul.f32 %v1151, 1.442695
      %v1159 = vpow.pop %v1158
      %v1160 = vadd.f32 %v1153, 1.0
      %v1161 = vadd.f32 %v1155, 1.0
      %v1162 = vadd.f32 %v1157, 1.0
      %v1163 = vadd.f32 %v1159, 1.0
      %v1164 = vmul.f32 %v1160, %v1160
      %v1165 = vmul.f32 %v1161, %v1161
      %v1166 = vmul.f32 %v1162, %v1162
      %v1167 = vmul.f32 %v1163, %v1163
      %v1168 = vsub.f32 %v1164, 1.0
      %v1169 = vsub.f32 %v1165, 1.0
      %v1170 = vsub.f32 %v1166, 1.0
      %v1171 = vsub.f32 %v1167, 1.0
      %v1172 = vadd.f32 %v1164, 1.0
      %v1173 = vadd.f32 %v1165, 1.0
      %v1174 = vadd.f32 %v1166, 1.0
      %v1175 = vadd.f32 %v1167, 1.0
      %v1176 = vrcp.pop %v1172
      %v1177 = vrcp.pop %v1173
      %v1178 = vrcp.pop %v1174
      %v1179 = vrcp.pop %v1175
      %v1180 = vmul.f32 %v1168, %v1176
      %v1181 = vmul.f32 %v1169, %v1177
      %v1182 = vmul.f32 %v1170, %v1178
      %v1183 = vmul.f32 %v1171, %v1179
      %vm1184 = vcmp.gt.f32.partialorder %v1138, 20.0
      %vm1185 = vcmp.gt.f32.partialorder %v1140, 20.0
      %vm1186 = vcmp.gt.f32.partialorder %v1144, 20.0
      %vm1187 = vcmp.gt.f32.partialorder %v1146, 20.0
      %v1188 = vmul.f32 %v1138, %v1180
      %v1189 = vmul.f32 %v1140, %v1181
      %v1190 = vmul.f32 %v1144, %v1182
      %v1191 = vmul.f32 %v1146, %v1183
      %v1192 = vsel %vm1184, %v1138, %v1188
      %v1193 = vsel %vm1185, %v1140, %v1189
      %v1194 = vsel %vm1186, %v1144, %v1190
      %v1195 = vsel %vm1187, %v1146, %v1191
      %v1196 = vadd.f32 %v1192, %v940
      %v1197 = vadd.f32 %v1193, %v941
      %v1198 = vadd.f32 %v1194, %v942
      %v1199 = vadd.f32 %v1195, %v943
      %v1200 = vld [vmem:[%s9] sm:$0xff]
      %v1201 = vld [vmem:[%s9 + $0x8] sm:$0xff]
      %v1202 = vld [vmem:[%s9 + $0x10] sm:$0xff]
      %v1203 = vld [vmem:[%s9 + $0x18] sm:$0xff]
      %v1204 = vld [vmem:[%s10] sm:$0xff]
      %v1205 = vld [vmem:[%s10 + $0x8] sm:$0xff]
      %v1206 = vld [vmem:[%s10 + $0x10] sm:$0xff]
      %v1207 = vld [vmem:[%s10 + $0x18] sm:$0xff]
      %1209 = vset.pattern.permute.xlu0 0
      %1210 = vperm.xlu0 %1209, %v1204
      %v1211 = vpop.permute.xlu0 %1210
      %1214 = vset.pattern.permute.xlu0 0
      %1215 = vperm.xlu0 %1214, %v1205
      %v1216 = vpop.permute.xlu0 %1215
      %1219 = vset.pattern.permute.xlu0 0
      %1220 = vperm.xlu0 %1219, %v1206
      %v1221 = vpop.permute.xlu0 %1220
      %1224 = vset.pattern.permute.xlu0 0
      %1225 = vperm.xlu0 %1224, %v1207
      %v1226 = vpop.permute.xlu0 %1225
      %v1229 = vsel %vm951, %v1200, 0
      %v1232 = vsel %vm951, %v1201, 0
      %v1235 = vsel %vm951, %v1202, 0
      %v1238 = vsel %vm951, %v1203, 0
      %1240 = vmatprep.subr.mxu0 0.0
      %1241 = vmatpush1.msra.mxu0 0.0
      %1242 = vmatprep.subr.mxu0 0.0
      %1243 = vmatpush1.msra.mxu0 0.0
      %1244 = vmatprep.subr.mxu0 0.0
      %1245 = vmatpush1.msra.mxu0 0.0
      %1246 = vmatprep.subr.mxu0 0.0
      %1247 = vmatpush1.msra.mxu0 0.0
      %1248 = vmatprep.subr.mxu0 0.0
      %1249 = vmatpush1.msra.mxu0 0.0
      %1250 = vmatprep.subr.mxu0 0.0
      %1251 = vmatpush1.msra.mxu0 0.0
      %1252 = vmatprep.subr.mxu0 0.0
      %1253 = vmatpush1.msra.mxu0 0.0
      %1254 = vmatprep.subr.mxu0 0.0
      %1255 = vmatpush1.msra.mxu0 0.0
      %1256 = vmatprep.subr.mxu0 0.0
      %1257 = vmatpush1.msra.mxu0 0.0
      %1258 = vmatprep.subr.mxu0 0.0
      %1259 = vmatpush1.msra.mxu0 0.0
      %1260 = vmatprep.subr.mxu0 0.0
      %1261 = vmatpush1.msra.mxu0 0.0
      %1262 = vmatprep.subr.mxu0 0.0
      %1263 = vmatpush1.msra.mxu0 0.0
      %1264 = vmatprep.subr.mxu0 0.0
      %1265 = vmatpush1.msra.mxu0 0.0
      %1266 = vmatprep.subr.mxu0 0.0
      %1267 = vmatpush1.msra.mxu0 0.0
      %1268 = vmatprep.subr.mxu0 %v1199
      %1269 = vmatpush1.msra.mxu0 %v1198
      %1270 = vmatprep.subr.mxu0 %v1197
      %1271 = vmatpush1.msra.mxu0 %v1196
      %1272 = vmatprep.subr.mxu0 0.0
      %1273 = vmatpush2.msra.mxu0 0.0
      %1274 = vmatprep.subr.mxu0 0.0
      %1275 = vmatpush2.msra.mxu0 0.0
      %1276 = vmatprep.subr.mxu0 0.0
      %1277 = vmatpush2.msra.mxu0 0.0
      %1278 = vmatprep.subr.mxu0 0.0
      %1279 = vmatpush2.msra.mxu0 0.0
      %1280 = vmatprep.subr.mxu0 0.0
      %1281 = vmatpush2.msra.mxu0 0.0
      %1282 = vmatprep.subr.mxu0 0.0
      %1283 = vmatpush2.msra.mxu0 0.0
      %1284 = vmatprep.subr.mxu0 0.0
      %1285 = vmatpush2.msra.mxu0 0.0
      %1286 = vmatprep.subr.mxu0 0.0
      %1287 = vmatpush2.msra.mxu0 0.0
      %1288 = vmatprep.subr.mxu0 0.0
      %1289 = vmatpush2.msra.mxu0 0.0
      %1290 = vmatprep.subr.mxu0 0.0
      %1291 = vmatpush2.msra.mxu0 0.0
      %1292 = vmatprep.subr.mxu0 0.0
      %1293 = vmatpush2.msra.mxu0 0.0
      %1294 = vmatprep.subr.mxu0 0.0
      %1295 = vmatpush2.msra.mxu0 0.0
      %1296 = vmatprep.subr.mxu0 0.0
      %1297 = vmatpush2.msra.mxu0 0.0
      %1298 = vmatprep.subr.mxu0 0.0
      %1299 = vmatpush2.msra.mxu0 0.0
      %1300 = vmatprep.subr.mxu0 0.0
      %1301 = vmatpush2.msra.mxu0 0.0
      %1302 = vmatprep.subr.mxu0 0.0
      %1303 = vmatpush2.msra.mxu0 0.0
      %1304 = vmatprep.mubr.f32.mxu0 0.0
      %1305 = vmatmul.mubr.f32.gmra.mxu0 %v1229
      %v1306 = vpop.f32.mrf.mxu0
      %v1307 = vadd.f32 %v1211, %v1306
      %v1308 = vpop.f32.mrf.mxu0
      %v1309 = vadd.f32 %v1211, %v1308
      %1310 = vmatprep.mubr.f32.mxu0 0.0
      %1311 = vmatmul.mubr.f32.gmra.mxu0 %v1232
      %v1312 = vpop.f32.mrf.mxu0
      %v1313 = vadd.f32 %v1216, %v1312
      %v1314 = vpop.f32.mrf.mxu0
      %v1315 = vadd.f32 %v1216, %v1314
      %1316 = vmatprep.mubr.f32.mxu0 0.0
      %1317 = vmatmul.mubr.f32.gmra.mxu0 %v1235
      %v1318 = vpop.f32.mrf.mxu0
      %v1319 = vadd.f32 %v1221, %v1318
      %v1320 = vpop.f32.mrf.mxu0
      %v1321 = vadd.f32 %v1221, %v1320
      %1322 = vmatprep.mubr.f32.mxu0 0.0
      %1323 = vmatmul.mubr.f32.gmra.mxu0 %v1238
      %v1324 = vpop.f32.mrf.mxu0
      %v1325 = vadd.f32 %v1226, %v1324
      %v1326 = vpop.f32.mrf.mxu0
      %v1327 = vadd.f32 %v1226, %v1326
      %1328 = vdwg.mxu0
      %v1329 = vmin.f32 %v1307, 20.0
      %v1330 = vmin.f32 %v1309, 20.0
      %v1331 = vmin.f32 %v1313, 20.0
      %v1332 = vmin.f32 %v1315, 20.0
      %v1333 = vmin.f32 %v1319, 20.0
      %v1334 = vmin.f32 %v1321, 20.0
      %v1335 = vmin.f32 %v1325, 20.0
      %v1336 = vmin.f32 %v1327, 20.0
      %v1337 = vmul.f32 %v1329, 1.442695
      %v1338 = vpow.pop %v1337
      %v1339 = vmul.f32 %v1330, 1.442695
      %v1340 = vpow.pop %v1339
      %v1341 = vmul.f32 %v1331, 1.442695
      %v1342 = vpow.pop %v1341
      %v1343 = vmul.f32 %v1332, 1.442695
      %v1344 = vpow.pop %v1343
      %v1345 = vmul.f32 %v1333, 1.442695
      %v1346 = vpow.pop %v1345
      %v1347 = vmul.f32 %v1334, 1.442695
      %v1348 = vpow.pop %v1347
      %v1349 = vmul.f32 %v1335, 1.442695
      %v1350 = vpow.pop %v1349
      %v1351 = vmul.f32 %v1336, 1.442695
      %v1352 = vpow.pop %v1351
      %v1353 = vadd.f32 %v1338, 1.0
      %v1354 = vadd.f32 %v1340, 1.0
      %v1355 = vadd.f32 %v1342, 1.0
      %v1356 = vadd.f32 %v1344, 1.0
      %v1357 = vadd.f32 %v1346, 1.0
      %v1358 = vadd.f32 %v1348, 1.0
      %v1359 = vadd.f32 %v1350, 1.0
      %v1360 = vadd.f32 %v1352, 1.0
      %v1361 = vmul.f32 %v1353, %v1353
      %v1362 = vmul.f32 %v1354, %v1354
      %v1363 = vmul.f32 %v1355, %v1355
      %v1364 = vmul.f32 %v1356, %v1356
      %v1365 = vmul.f32 %v1357, %v1357
      %v1366 = vmul.f32 %v1358, %v1358
      %v1367 = vmul.f32 %v1359, %v1359
      %v1368 = vmul.f32 %v1360, %v1360
      %v1369 = vsub.f32 %v1361, 1.0
      %v1370 = vsub.f32 %v1362, 1.0
      %v1371 = vsub.f32 %v1363, 1.0
      %v1372 = vsub.f32 %v1364, 1.0
      %v1373 = vsub.f32 %v1365, 1.0
      %v1374 = vsub.f32 %v1366, 1.0
      %v1375 = vsub.f32 %v1367, 1.0
      %v1376 = vsub.f32 %v1368, 1.0
      %v1377 = vadd.f32 %v1361, 1.0
      %v1378 = vadd.f32 %v1362, 1.0
      %v1379 = vadd.f32 %v1363, 1.0
      %v1380 = vadd.f32 %v1364, 1.0
      %v1381 = vadd.f32 %v1365, 1.0
      %v1382 = vadd.f32 %v1366, 1.0
      %v1383 = vadd.f32 %v1367, 1.0
      %v1384 = vadd.f32 %v1368, 1.0
      %v1385 = vrcp.pop %v1377
      %v1386 = vrcp.pop %v1378
      %v1387 = vrcp.pop %v1379
      %v1388 = vrcp.pop %v1380
      %v1389 = vrcp.pop %v1381
      %v1390 = vrcp.pop %v1382
      %v1391 = vrcp.pop %v1383
      %v1392 = vrcp.pop %v1384
      %v1393 = vmul.f32 %v1369, %v1385
      %v1394 = vmul.f32 %v1370, %v1386
      %v1395 = vmul.f32 %v1371, %v1387
      %v1396 = vmul.f32 %v1372, %v1388
      %v1397 = vmul.f32 %v1373, %v1389
      %v1398 = vmul.f32 %v1374, %v1390
      %v1399 = vmul.f32 %v1375, %v1391
      %v1400 = vmul.f32 %v1376, %v1392
      %vm1401 = vcmp.gt.f32.partialorder %v1307, 20.0
      %vm1402 = vcmp.gt.f32.partialorder %v1309, 20.0
      %vm1403 = vcmp.gt.f32.partialorder %v1313, 20.0
      %vm1404 = vcmp.gt.f32.partialorder %v1315, 20.0
      %vm1405 = vcmp.gt.f32.partialorder %v1319, 20.0
      %vm1406 = vcmp.gt.f32.partialorder %v1321, 20.0
      %vm1407 = vcmp.gt.f32.partialorder %v1325, 20.0
      %vm1408 = vcmp.gt.f32.partialorder %v1327, 20.0
      %v1409 = vmul.f32 %v1307, %v1393
      %v1410 = vmul.f32 %v1309, %v1394
      %v1411 = vmul.f32 %v1313, %v1395
      %v1412 = vmul.f32 %v1315, %v1396
      %v1413 = vmul.f32 %v1319, %v1397
      %v1414 = vmul.f32 %v1321, %v1398
      %v1415 = vmul.f32 %v1325, %v1399
      %v1416 = vmul.f32 %v1327, %v1400
      %v1417 = vsel %vm1401, %v1307, %v1409
      %v1418 = vsel %vm1402, %v1309, %v1410
      %v1419 = vsel %vm1403, %v1313, %v1411
      %v1420 = vsel %vm1404, %v1315, %v1412
      %v1421 = vsel %vm1405, %v1319, %v1413
      %v1422 = vsel %vm1406, %v1321, %v1414
      %v1423 = vsel %vm1407, %v1325, %v1415
      %v1424 = vsel %vm1408, %v1327, %v1416
      %v1425 = vadd.f32 %v1417, %v790
      %v1426 = vadd.f32 %v1418, %v791
      %v1427 = vadd.f32 %v1419, %v792
      %v1428 = vadd.f32 %v1420, %v793
      %v1429 = vadd.f32 %v1421, %v794
      %v1430 = vadd.f32 %v1422, %v795
      %v1431 = vadd.f32 %v1423, %v796
      %v1432 = vadd.f32 %v1424, %v797
      %v1433 = vld [vmem:[%s11] sm:$0xff]
      %v1434 = vld [vmem:[%s11 + $0x8] sm:$0xff]
      %v1435 = vld [vmem:[%s11 + $0x10] sm:$0xff]
      %v1436 = vld [vmem:[%s11 + $0x18] sm:$0xff]
      %v1437 = vld [vmem:[%s12] sm:$0xff]
      %v1438 = vld [vmem:[%s12 + $0x8] sm:$0xff]
      %v1439 = vld [vmem:[%s12 + $0x10] sm:$0xff]
      %v1440 = vld [vmem:[%s12 + $0x18] sm:$0xff]
      %1442 = vset.pattern.permute.xlu0 0
      %1443 = vperm.xlu0 %1442, %v1437
      %v1444 = vpop.permute.xlu0 %1443
      %1447 = vset.pattern.permute.xlu0 0
      %1448 = vperm.xlu0 %1447, %v1438
      %v1449 = vpop.permute.xlu0 %1448
      %1452 = vset.pattern.permute.xlu0 0
      %1453 = vperm.xlu0 %1452, %v1439
      %v1454 = vpop.permute.xlu0 %1453
      %1457 = vset.pattern.permute.xlu0 0
      %1458 = vperm.xlu0 %1457, %v1440
      %v1459 = vpop.permute.xlu0 %1458
      %v1462 = vsel %vm812, %v1433, 0
      %v1465 = vsel %vm812, %v1434, 0
      %v1468 = vsel %vm812, %v1435, 0
      %v1471 = vsel %vm812, %v1436, 0
      %1473 = vmatprep.subr.mxu0 0.0
      %1474 = vmatpush1.msra.mxu0 0.0
      %1475 = vmatprep.subr.mxu0 0.0
      %1476 = vmatpush1.msra.mxu0 0.0
      %1477 = vmatprep.subr.mxu0 0.0
      %1478 = vmatpush1.msra.mxu0 0.0
      %1479 = vmatprep.subr.mxu0 0.0
      %1480 = vmatpush1.msra.mxu0 0.0
      %1481 = vmatprep.subr.mxu0 0.0
      %1482 = vmatpush1.msra.mxu0 0.0
      %1483 = vmatprep.subr.mxu0 0.0
      %1484 = vmatpush1.msra.mxu0 0.0
      %1485 = vmatprep.subr.mxu0 0.0
      %1486 = vmatpush1.msra.mxu0 0.0
      %1487 = vmatprep.subr.mxu0 0.0
      %1488 = vmatpush1.msra.mxu0 0.0
      %1489 = vmatprep.subr.mxu0 0.0
      %1490 = vmatpush1.msra.mxu0 0.0
      %1491 = vmatprep.subr.mxu0 0.0
      %1492 = vmatpush1.msra.mxu0 0.0
      %1493 = vmatprep.subr.mxu0 0.0
      %1494 = vmatpush1.msra.mxu0 0.0
      %1495 = vmatprep.subr.mxu0 0.0
      %1496 = vmatpush1.msra.mxu0 0.0
      %1497 = vmatprep.subr.mxu0 %v1432
      %1498 = vmatpush1.msra.mxu0 %v1431
      %1499 = vmatprep.subr.mxu0 %v1430
      %1500 = vmatpush1.msra.mxu0 %v1429
      %1501 = vmatprep.subr.mxu0 %v1428
      %1502 = vmatpush1.msra.mxu0 %v1427
      %1503 = vmatprep.subr.mxu0 %v1426
      %1504 = vmatpush1.msra.mxu0 %v1425
      %1505 = vmatprep.subr.mxu0 0.0
      %1506 = vmatpush2.msra.mxu0 0.0
      %1507 = vmatprep.subr.mxu0 0.0
      %1508 = vmatpush2.msra.mxu0 0.0
      %1509 = vmatprep.subr.mxu0 0.0
      %1510 = vmatpush2.msra.mxu0 0.0
      %1511 = vmatprep.subr.mxu0 0.0
      %1512 = vmatpush2.msra.mxu0 0.0
      %1513 = vmatprep.subr.mxu0 0.0
      %1514 = vmatpush2.msra.mxu0 0.0
      %1515 = vmatprep.subr.mxu0 0.0
      %1516 = vmatpush2.msra.mxu0 0.0
      %1517 = vmatprep.subr.mxu0 0.0
      %1518 = vmatpush2.msra.mxu0 0.0
      %1519 = vmatprep.subr.mxu0 0.0
      %1520 = vmatpush2.msra.mxu0 0.0
      %1521 = vmatprep.subr.mxu0 0.0
      %1522 = vmatpush2.msra.mxu0 0.0
      %1523 = vmatprep.subr.mxu0 0.0
      %1524 = vmatpush2.msra.mxu0 0.0
      %1525 = vmatprep.subr.mxu0 0.0
      %1526 = vmatpush2.msra.mxu0 0.0
      %1527 = vmatprep.subr.mxu0 0.0
      %1528 = vmatpush2.msra.mxu0 0.0
      %1529 = vmatprep.subr.mxu0 0.0
      %1530 = vmatpush2.msra.mxu0 0.0
      %1531 = vmatprep.subr.mxu0 0.0
      %1532 = vmatpush2.msra.mxu0 0.0
      %1533 = vmatprep.subr.mxu0 0.0
      %1534 = vmatpush2.msra.mxu0 0.0
      %1535 = vmatprep.subr.mxu0 0.0
      %1536 = vmatpush2.msra.mxu0 0.0
      %1537 = vmatprep.mubr.f32.mxu0 0.0
      %1538 = vmatmul.mubr.f32.gmra.mxu0 %v1462
      %v1539 = vpop.f32.mrf.mxu0
      %v1540 = vadd.f32 %v1444, %v1539
      %v1541 = vpop.f32.mrf.mxu0
      %v1542 = vadd.f32 %v1444, %v1541
      %1543 = vmatprep.mubr.f32.mxu0 0.0
      %1544 = vmatmul.mubr.f32.gmra.mxu0 %v1465
      %v1545 = vpop.f32.mrf.mxu0
      %v1546 = vadd.f32 %v1449, %v1545
      %v1547 = vpop.f32.mrf.mxu0
      %v1548 = vadd.f32 %v1449, %v1547
      %1549 = vmatprep.mubr.f32.mxu0 0.0
      %1550 = vmatmul.mubr.f32.gmra.mxu0 %v1468
      %v1551 = vpop.f32.mrf.mxu0
      %v1552 = vadd.f32 %v1454, %v1551
      %v1553 = vpop.f32.mrf.mxu0
      %v1554 = vadd.f32 %v1454, %v1553
      %1555 = vmatprep.mubr.f32.mxu0 0.0
      %1556 = vmatmul.mubr.f32.gmra.mxu0 %v1471
      %v1557 = vpop.f32.mrf.mxu0
      %v1558 = vadd.f32 %v1459, %v1557
      %v1559 = vpop.f32.mrf.mxu0
      %v1560 = vadd.f32 %v1459, %v1559
      %1561 = vdwg.mxu0
      %v1562 = vsub.f32 0.0, %v1540
      %v1563 = vsub.f32 0.0, %v1542
      %v1564 = vsub.f32 0.0, %v1546
      %v1565 = vsub.f32 0.0, %v1548
      %v1566 = vsub.f32 0.0, %v1552
      %v1567 = vsub.f32 0.0, %v1554
      %v1568 = vsub.f32 0.0, %v1558
      %v1569 = vsub.f32 0.0, %v1560
      %v1570 = vmin.f32 %v1562, 30.0
      %v1571 = vmin.f32 %v1563, 30.0
      %v1572 = vmin.f32 %v1564, 30.0
      %v1573 = vmin.f32 %v1565, 30.0
      %v1574 = vmin.f32 %v1566, 30.0
      %v1575 = vmin.f32 %v1567, 30.0
      %v1576 = vmin.f32 %v1568, 30.0
      %v1577 = vmin.f32 %v1569, 30.0
      %v1578 = vmul.f32 %v1570, 1.442695
      %v1579 = vpow.pop %v1578
      %v1580 = vmul.f32 %v1571, 1.442695
      %v1581 = vpow.pop %v1580
      %v1582 = vmul.f32 %v1572, 1.442695
      %v1583 = vpow.pop %v1582
      %v1584 = vmul.f32 %v1573, 1.442695
      %v1585 = vpow.pop %v1584
      %v1586 = vmul.f32 %v1574, 1.442695
      %v1587 = vpow.pop %v1586
      %v1588 = vmul.f32 %v1575, 1.442695
      %v1589 = vpow.pop %v1588
      %v1590 = vmul.f32 %v1576, 1.442695
      %v1591 = vpow.pop %v1590
      %v1592 = vmul.f32 %v1577, 1.442695
      %v1593 = vpow.pop %v1592
      %v1594 = vadd.f32 %v1579, 1.0
      %v1595 = vadd.f32 %v1581, 1.0
      %v1596 = vadd.f32 %v1583, 1.0
      %v1597 = vadd.f32 %v1585, 1.0
      %v1598 = vadd.f32 %v1587, 1.0
      %v1599 = vadd.f32 %v1589, 1.0
      %v1600 = vadd.f32 %v1591, 1.0
      %v1601 = vadd.f32 %v1593, 1.0
      %v1602 = vrcp.pop %v1594
      %v1603 = vrcp.pop %v1595
      %v1604 = vrcp.pop %v1596
      %v1605 = vrcp.pop %v1597
      %v1606 = vrcp.pop %v1598
      %v1607 = vrcp.pop %v1599
      %v1608 = vrcp.pop %v1600
      %v1609 = vrcp.pop %v1601
      %1610 = vxpose.xlu0.b32.start [1/16] %v1602, 128
      %1611 = vxpose.xlu0.b32.cont [2/16] %v1604, 128
      %1612 = vxpose.xlu0.b32.cont [3/16] %v1606, 128
      %1613 = vxpose.xlu0.b32.cont [4/16] %v1608, 128
      %1614 = vxpose.xlu0.b32.cont [5/16] 0.0, 128
      %1615 = vxpose.xlu0.b32.cont [6/16] 0.0, 128
      %1616 = vxpose.xlu0.b32.cont [7/16] 0.0, 128
      %1617 = vxpose.xlu0.b32.cont [8/16] 0.0, 128
      %1618 = vxpose.xlu0.b32.cont [9/16] 0.0, 128
      %1619 = vxpose.xlu0.b32.cont [10/16] 0.0, 128
      %1620 = vxpose.xlu0.b32.cont [11/16] 0.0, 128
      %1621 = vxpose.xlu0.b32.cont [12/16] 0.0, 128
      %1622 = vxpose.xlu0.b32.cont [13/16] 0.0, 128
      %1623 = vxpose.xlu0.b32.cont [14/16] 0.0, 128
      %1624 = vxpose.xlu0.b32.cont [15/16] 0.0, 128
      %1625 = vxpose.xlu0.b32.end [16/16] 0.0, 128
      %v1626 = vpop.trf.xlu0
      %v1627 = vpop.trf.xlu0
      %v1628 = vpop.trf.xlu0
      %v1629 = vpop.trf.xlu0
      %v1630 = vpop.trf.xlu0
      %v1631 = vpop.trf.xlu0
      %v1632 = vpop.trf.xlu0
      %v1633 = vpop.trf.xlu0
      %v1634 = vpop.trf.xlu0
      %v1635 = vpop.trf.xlu0
      %v1636 = vpop.trf.xlu0
      %v1637 = vpop.trf.xlu0
      %v1638 = vpop.trf.xlu0
      %v1639 = vpop.trf.xlu0
      %v1640 = vpop.trf.xlu0
      %v1641 = vpop.trf.xlu0
      %1642 = vxpose.xlu0.b32.start [1/16] %v1603, 128
      %1643 = vxpose.xlu0.b32.cont [2/16] %v1605, 128
      %1644 = vxpose.xlu0.b32.cont [3/16] %v1607, 128
      %1645 = vxpose.xlu0.b32.cont [4/16] %v1609, 128
      %1646 = vxpose.xlu0.b32.cont [5/16] 0.0, 128
      %1647 = vxpose.xlu0.b32.cont [6/16] 0.0, 128
      %1648 = vxpose.xlu0.b32.cont [7/16] 0.0, 128
      %1649 = vxpose.xlu0.b32.cont [8/16] 0.0, 128
      %1650 = vxpose.xlu0.b32.cont [9/16] 0.0, 128
      %1651 = vxpose.xlu0.b32.cont [10/16] 0.0, 128
      %1652 = vxpose.xlu0.b32.cont [11/16] 0.0, 128
      %1653 = vxpose.xlu0.b32.cont [12/16] 0.0, 128
      %1654 = vxpose.xlu0.b32.cont [13/16] 0.0, 128
      %1655 = vxpose.xlu0.b32.cont [14/16] 0.0, 128
      %1656 = vxpose.xlu0.b32.cont [15/16] 0.0, 128
      %1657 = vxpose.xlu0.b32.end [16/16] 0.0, 128
      %v1658 = vpop.trf.xlu0
      %v1659 = vpop.trf.xlu0
      %v1660 = vpop.trf.xlu0
      %v1661 = vpop.trf.xlu0
      %v1662 = vpop.trf.xlu0
      %v1663 = vpop.trf.xlu0
      %v1664 = vpop.trf.xlu0
      %v1665 = vpop.trf.xlu0
      %v1666 = vpop.trf.xlu0
      %v1667 = vpop.trf.xlu0
      %v1668 = vpop.trf.xlu0
      %v1669 = vpop.trf.xlu0
      %v1670 = vpop.trf.xlu0
      %v1671 = vpop.trf.xlu0
      %v1672 = vpop.trf.xlu0
      %v1673 = vpop.trf.xlu0
      %1674 = vst.msk [vmem:[%s442] sm:$0xff] %vm504, %v1626
      %1675 = vst.msk [vmem:[%s442 + $0x8] sm:$0xff] %vm504, %v1627
      %1676 = vst.msk [vmem:[%s442 + $0x10] sm:$0xff] %vm504, %v1628
      %1677 = vst.msk [vmem:[%s442 + $0x18] sm:$0xff] %vm504, %v1629
      %1678 = vst.msk [vmem:[%s442 + $0x20] sm:$0xff] %vm504, %v1630
      %1679 = vst.msk [vmem:[%s442 + $0x28] sm:$0xff] %vm504, %v1631
      %1680 = vst.msk [vmem:[%s442 + $0x30] sm:$0xff] %vm504, %v1632
      %1681 = vst.msk [vmem:[%s442 + $0x38] sm:$0xff] %vm504, %v1633
      %1682 = vst.msk [vmem:[%s442 + $0x40] sm:$0xff] %vm504, %v1634
      %1683 = vst.msk [vmem:[%s442 + $0x48] sm:$0xff] %vm504, %v1635
      %1684 = vst.msk [vmem:[%s442 + $0x50] sm:$0xff] %vm504, %v1636
      %1685 = vst.msk [vmem:[%s442 + $0x58] sm:$0xff] %vm504, %v1637
      %1686 = vst.msk [vmem:[%s442 + $0x60] sm:$0xff] %vm504, %v1638
      %1687 = vst.msk [vmem:[%s442 + $0x68] sm:$0xff] %vm504, %v1639
      %1688 = vst.msk [vmem:[%s442 + $0x70] sm:$0xff] %vm504, %v1640
      %1689 = vst.msk [vmem:[%s442 + $0x78] sm:$0xff] %vm504, %v1641
      %1690 = vst.msk [vmem:[%s442 + $0x80] sm:$0xff] %vm504, %v1658
      %1691 = vst.msk [vmem:[%s442 + $0x88] sm:$0xff] %vm504, %v1659
      %1692 = vst.msk [vmem:[%s442 + $0x90] sm:$0xff] %vm504, %v1660
      %1693 = vst.msk [vmem:[%s442 + $0x98] sm:$0xff] %vm504, %v1661
      %1694 = vst.msk [vmem:[%s442 + $0xa0] sm:$0xff] %vm504, %v1662
      %1695 = vst.msk [vmem:[%s442 + $0xa8] sm:$0xff] %vm504, %v1663
      %1696 = vst.msk [vmem:[%s442 + $0xb0] sm:$0xff] %vm504, %v1664
      %1697 = vst.msk [vmem:[%s442 + $0xb8] sm:$0xff] %vm504, %v1665
      %1698 = vst.msk [vmem:[%s442 + $0xc0] sm:$0xff] %vm504, %v1666
      %1699 = vst.msk [vmem:[%s442 + $0xc8] sm:$0xff] %vm504, %v1667
      %1700 = vst.msk [vmem:[%s442 + $0xd0] sm:$0xff] %vm504, %v1668
      %1701 = vst.msk [vmem:[%s442 + $0xd8] sm:$0xff] %vm504, %v1669
      %1702 = vst.msk [vmem:[%s442 + $0xe0] sm:$0xff] %vm504, %v1670
      %1703 = vst.msk [vmem:[%s442 + $0xe8] sm:$0xff] %vm504, %v1671
      %1704 = vst.msk [vmem:[%s442 + $0xf0] sm:$0xff] %vm504, %v1672
      %1705 = vst.msk [vmem:[%s442 + $0xf8] sm:$0xff] %vm504, %v1673
      %s1706 = smul.u32 32, %s24
      %p1707 = scmp.lt.s32.totalorder %s1706, 63
      %s1708 = scalar_select %p1707, %s1706, 63
      %s1709 = smul.addr %s1708, 8
      %s1710 = scalar_lea.vmem %s13, %s1709
      // Predicated region
      $region73: #{autoencoder3_forward.1} parent=71 // pred_check
        %p1711 = pneg %p320
      $region74: #{autoencoder3_forward.1} parent=71 // pred_check_branch
        %1713 = sbr.rel (%p1711) target = $region76
      $region75: #{autoencoder3_forward.1} parent=71 // pred_region
        %s1714 = smul.u32 32, %s24
      $region76: #{autoencoder3_forward.1} parent=71 // pred_fallthru
        _
    $region72: #{autoencoder3_forward.1} parent=5 // pred_fallthru
      _
    %p1715 = scmp.le.s32.totalorder 2, %s19
    // Predicated region
    $region77: #{autoencoder3_forward.1} parent=5 // pred_check
      %p1716 = pneg %p1715
    $region78: #{autoencoder3_forward.1} parent=5 // pred_check_branch
      %1718 = sbr.rel (%p1716) target = $region80
    $region79: #{autoencoder3_forward.1} parent=5 // pred_region
      %s1719 = ssub.s32 %s19, 2
      // Predicated region
      $region81: #{autoencoder3_forward.1} parent=79 // pred_check
        %p1720 = pneg %p326
      $region82: #{autoencoder3_forward.1} parent=79 // pred_check_branch
        %1722 = sbr.rel (%p1720) target = $region84
      $region83: #{autoencoder3_forward.1} parent=79 // pred_region
        %s1723 = smul.u32 32, %s25
        %p1724 = scmp.lt.s32.totalorder %s1723, 63
        %s1725 = scalar_select %p1724, %s1723, 63
        %s1726 = smul.addr %s1725, 8
        %s1727 = scalar_lea.vmem %s13, %s1726
      $region84: #{autoencoder3_forward.1} parent=79 // pred_fallthru
        _
    $region80: #{autoencoder3_forward.1} parent=5 // pred_fallthru
      _
  $region6: #{autoencoder3_forward.1} parent=0 // loop_footer
    %s23 = sadd.s32 1, %s19
  $region7: #{autoencoder3_forward.1} parent=0 // loop_footer_branch
    %18 = sbr.rel target = $region3
  $region8: #{autoencoder3_forward.1} parent=0 // loop_exit
    _

</llo_original>
